<compile_context>
chip_gen: v7x
topology: tpu7x:2x2x1
jax: 0.10.0
libtpu: 0.0.40
codegen_flags: <defaults>
</compile_context>

<pallas_src>
import jax
import jax.numpy as jnp
from jax import lax
from jax.experimental import pallas as pl
from jax.experimental.pallas import tpu as pltpu

K_IN = 3 * 256 * 256               # fc2 input features = 196608
N_OUT = 1                          # fc2 output features
LANES = 128
K_ROWS = K_IN // LANES             # 1536 rows of 128 lanes (dense repack)
N_SPLIT = 2                        # K reduction split into 2 grid steps
ROWS_PER_BLOCK = K_ROWS // N_SPLIT # 768 rows per grid step
CHUNK_ROWS = 64                    # rows per unrolled accumulation step (~16 vregs/chunk)
assert K_IN % LANES == 0 and K_ROWS % N_SPLIT == 0
assert ROWS_PER_BLOCK % CHUNK_ROWS == 0


def fc2_kernel(b_ref, x_ref, w_ref, o_ref, acc_ref):
    # b_ref: SMEM (1,) f32 bias; x_ref: (B, ROWS_PER_BLOCK, 128) f32;
    # w_ref: (ROWS_PER_BLOCK, 128) f32; o_ref: (B, 1); acc_ref: (B, 128) f32.
    p = pl.program_id(0)

    @pl.when(p == 0)
    def _():
        acc_ref[...] = jnp.zeros_like(acc_ref)

    n_chunks = ROWS_PER_BLOCK // CHUNK_ROWS

    # Streamed accumulation: never materialize the full (B, ROWS_PER_BLOCK, 128)
    # product; each chunk is multiplied, sublane-reduced (XLU) and folded into
    # the small per-lane accumulator.
    def body(c, carry):
        r0 = pl.multiple_of(c * CHUNK_ROWS, CHUNK_ROWS)
        xc = x_ref[:, pl.ds(r0, CHUNK_ROWS), :]              # (B, CHUNK_ROWS, 128)
        wc = w_ref[pl.ds(r0, CHUNK_ROWS), :]                  # (CHUNK_ROWS, 128)
        acc_ref[...] += jnp.sum(xc * wc[None, :, :], axis=1)  # (B, 128)
        return carry

    lax.fori_loop(0, n_chunks, body, 0, unroll=True)

    @pl.when(p == pl.num_programs(0) - 1)
    def _():
        row_sum = jnp.sum(acc_ref[...], axis=-1, keepdims=True)  # (B, 1) lane reduce
        o_ref[...] = (row_sum + b_ref[0]).astype(o_ref.dtype)


def local_net_forward(x, w_fc2_packed, b_fc2):
    """x: (B, 3, 256, 256) f32; w_fc2_packed: (K_ROWS, 128) f32; b_fc2: (1,) f32.
    Returns (B, 1) == x.view(B, -1) @ W.T + b."""
    B = x.shape[0]
    x_packed = x.reshape(B, K_ROWS, LANES)  # metadata-only view of contiguous NCHW

    return pl.pallas_call(
        fc2_kernel,
        out_shape=jax.ShapeDtypeStruct((B, N_OUT), x.dtype),
        grid_spec=pltpu.PrefetchScalarGridSpec(
            num_scalar_prefetch=0,
            grid=(N_SPLIT,),
            in_specs=[
                # Bias scalar lives in SMEM for the in-kernel epilogue add.
                pl.BlockSpec(memory_space=pltpu.MemorySpace.SMEM),
                pl.BlockSpec((B, ROWS_PER_BLOCK, LANES), lambda p: (0, p, 0)),
                pl.BlockSpec((ROWS_PER_BLOCK, LANES), lambda p: (p, 0)),
            ],
            # Same block index for both K steps -> output stays resident in VMEM
            # and is written back to HBM once, after the final step.
            out_specs=pl.BlockSpec((B, N_OUT), lambda p: (0, 0)),
            scratch_shapes=[pltpu.VMEM((B, LANES), jnp.float32)],
        ),
        compiler_params=pltpu.CompilerParams(
            dimension_semantics=("arbitrary",),  # K is a reduction axis
        ),
    )(b_fc2, x_packed, w_fc2_packed)


def init_params(key):
    # nn.Linear(3*256*256, 1) default init: U(-1/sqrt(fan_in), +1/sqrt(fan_in)).
    # The weight is stored directly in its kernel layout (K_ROWS, 128); its
    # row-major order is identical to the logical (1, K_IN) weight.
    kw, kb = jax.random.split(key)
    bound = 1.0 / jnp.sqrt(jnp.float32(K_IN))
    w_fc2_packed = jax.random.uniform(kw, (K_ROWS, LANES), jnp.float32, -bound, bound)
    b_fc2 = jax.random.uniform(kb, (N_OUT,), jnp.float32, -bound, bound)
    # TODO(synk): conv1, pool, fc1 are unused in LocalNet.forward, so no kernels are emitted for them.
    return w_fc2_packed, b_fc2


if __name__ == "__main__":
    key = jax.random.PRNGKey(0)
    kx, kp = jax.random.split(key)

    B = 2
    x = jax.random.normal(kx, (B, 3, 256, 256), jnp.float32)
    w_fc2_packed, b_fc2 = init_params(kp)

    out = local_net_forward(x, w_fc2_packed, b_fc2)
    out = jax.block_until_ready(out)

    # Plain-JAX reference of the torch forward.
    ref = x.reshape(B, K_IN) @ w_fc2_packed.reshape(N_OUT, K_IN).T + b_fc2
    assert out.shape == (B, N_OUT)
    assert jnp.allclose(out, ref, atol=1e-3, rtol=1e-3)

    print("KERNEL_OK")
</pallas_src>

<mosaic_0001>
module attributes {stable_mosaic.version = 11 : i64} {
  func.func @fc2_kernel(%arg0: i32, %arg1: memref<1xf32, #tpu.memory_space<smem>>, %arg2: memref<2x768x128xf32, #tpu.memory_space<vmem>>, %arg3: memref<768x128xf32, #tpu.memory_space<vmem>>, %arg4: memref<2x1xf32, #tpu.memory_space<vmem>>, %arg5: memref<2x128xf32, #tpu.memory_space<vmem>>) attributes {dimension_semantics = [#tpu.dimension_semantics<arbitrary>], iteration_bounds = array<i64: 2>, scalar_prefetch = 0 : i64, scratch_operands = 1 : i64, tpu.core_type = #tpu.core_type<tc>, window_params = [{transform_indices = @transform_0, window_bounds = array<i64: 1>}, {transform_indices = @transform_1, window_bounds = array<i64: 2, 768, 128>}, {transform_indices = @transform_2, window_bounds = array<i64: 768, 128>}, {pipeline_mode = #tpu.pipeline_mode<synchronous>, transform_indices = @transform_3, window_bounds = array<i64: 2, 1>}]} {
    %c0_i32 = arith.constant 0 : i32
    %0 = arith.cmpi eq, %arg0, %c0_i32 : i32
    %1 = arith.extui %0 : i1 to i32
    %c0_i32_0 = arith.constant 0 : i32
    %2 = arith.cmpi ne, %1, %c0_i32_0 : i32
    scf.if %2 {
      %cst_109 = arith.constant 0.000000e+00 : f32
      %162 = vector.broadcast %cst_109 : f32 to vector<2x128xf32>
      %c0_110 = arith.constant 0 : index
      %c0_111 = arith.constant 0 : index
      %163 = vector.load %arg5[%c0_110, %c0_111] : memref<2x128xf32, #tpu.memory_space<vmem>>, vector<2x128xf32>
      tpu.vector_store %arg5[%c0_110, %c0_111], %162 {strides = array<i32>} : memref<2x128xf32, #tpu.memory_space<vmem>>, vector<2x128xf32>,
    } else {
    }
    %c0_i32_1 = arith.constant 0 : i32
    %c64_i32 = arith.constant 64 : i32
    %3 = arith.muli %c0_i32_1, %c64_i32 : i32
    %4 = tpu.assume_multiple %3, 64 : i32
    %c0 = arith.constant 0 : index
    %5 = arith.index_cast %4 : i32 to index
    %c0_2 = arith.constant 0 : index
    %6 = vector.load %arg2[%c0, %5, %c0_2] : memref<2x768x128xf32, #tpu.memory_space<vmem>>, vector<2x64x128xf32>
    %7 = arith.index_cast %4 : i32 to index
    %c0_3 = arith.constant 0 : index
    %8 = vector.load %arg3[%7, %c0_3] : memref<768x128xf32, #tpu.memory_space<vmem>>, vector<64x128xf32>
    %c0_4 = arith.constant 0 : index
    %c0_5 = arith.constant 0 : index
    %9 = vector.load %arg5[%c0_4, %c0_5] : memref<2x128xf32, #tpu.memory_space<vmem>>, vector<2x128xf32>
    %10 = vector.shape_cast %8 : vector<64x128xf32> to vector<1x64x128xf32>
    %11 = vector.broadcast %10 : vector<1x64x128xf32> to vector<2x64x128xf32>
    %12 = arith.mulf %6, %11 : vector<2x64x128xf32>
    %cst = arith.constant dense<0.000000e+00> : vector<2x128xf32>
    %13 = vector.multi_reduction <add>, %12, %cst [1] : vector<2x64x128xf32> to vector<2x128xf32>
    %14 = arith.addf %9, %13 : vector<2x128xf32>
    %c0_6 = arith.constant 0 : index
    %c0_7 = arith.constant 0 : index
    %15 = vector.load %arg5[%c0_6, %c0_7] : memref<2x128xf32, #tpu.memory_space<vmem>>, vector<2x128xf32>
    tpu.vector_store %arg5[%c0_6, %c0_7], %14 {strides = array<i32>} : memref<2x128xf32, #tpu.memory_space<vmem>>, vector<2x128xf32>,
    %c1_i32 = arith.constant 1 : i32
    %c64_i32_8 = arith.constant 64 : i32
    %16 = arith.muli %c1_i32, %c64_i32_8 : i32
    %17 = tpu.assume_multiple %16, 64 : i32
    %c0_9 = arith.constant 0 : index
    %18 = arith.index_cast %17 : i32 to index
    %c0_10 = arith.constant 0 : index
    %19 = vector.load %arg2[%c0_9, %18, %c0_10] : memref<2x768x128xf32, #tpu.memory_space<vmem>>, vector<2x64x128xf32>
    %20 = arith.index_cast %17 : i32 to index
    %c0_11 = arith.constant 0 : index
    %21 = vector.load %arg3[%20, %c0_11] : memref<768x128xf32, #tpu.memory_space<vmem>>, vector<64x128xf32>
    %c0_12 = arith.constant 0 : index
    %c0_13 = arith.constant 0 : index
    %22 = vector.load %arg5[%c0_12, %c0_13] : memref<2x128xf32, #tpu.memory_space<vmem>>, vector<2x128xf32>
    %23 = vector.shape_cast %21 : vector<64x128xf32> to vector<1x64x128xf32>
    %24 = vector.broadcast %23 : vector<1x64x128xf32> to vector<2x64x128xf32>
    %25 = arith.mulf %19, %24 : vector<2x64x128xf32>
    %cst_14 = arith.constant dense<0.000000e+00> : vector<2x128xf32>
    %26 = vector.multi_reduction <add>, %25, %cst_14 [1] : vector<2x64x128xf32> to vector<2x128xf32>
    %27 = arith.addf %22, %26 : vector<2x128xf32>
    %c0_15 = arith.constant 0 : index
    %c0_16 = arith.constant 0 : index
    %28 = vector.load %arg5[%c0_15, %c0_16] : memref<2x128xf32, #tpu.memory_space<vmem>>, vector<2x128xf32>
    tpu.vector_store %arg5[%c0_15, %c0_16], %27 {strides = array<i32>} : memref<2x128xf32, #tpu.memory_space<vmem>>, vector<2x128xf32>,
    %c2_i32 = arith.constant 2 : i32
    %c64_i32_17 = arith.constant 64 : i32
    %29 = arith.muli %c2_i32, %c64_i32_17 : i32
    %30 = tpu.assume_multiple %29, 64 : i32
    %c0_18 = arith.constant 0 : index
    %31 = arith.index_cast %30 : i32 to index
    %c0_19 = arith.constant 0 : index
    %32 = vector.load %arg2[%c0_18, %31, %c0_19] : memref<2x768x128xf32, #tpu.memory_space<vmem>>, vector<2x64x128xf32>
    %33 = arith.index_cast %30 : i32 to index
    %c0_20 = arith.constant 0 : index
    %34 = vector.load %arg3[%33, %c0_20] : memref<768x128xf32, #tpu.memory_space<vmem>>, vector<64x128xf32>
    %c0_21 = arith.constant 0 : index
    %c0_22 = arith.constant 0 : index
    %35 = vector.load %arg5[%c0_21, %c0_22] : memref<2x128xf32, #tpu.memory_space<vmem>>, vector<2x128xf32>
    %36 = vector.shape_cast %34 : vector<64x128xf32> to vector<1x64x128xf32>
    %37 = vector.broadcast %36 : vector<1x64x128xf32> to vector<2x64x128xf32>
    %38 = arith.mulf %32, %37 : vector<2x64x128xf32>
    %cst_23 = arith.constant dense<0.000000e+00> : vector<2x128xf32>
    %39 = vector.multi_reduction <add>, %38, %cst_23 [1] : vector<2x64x128xf32> to vector<2x128xf32>
    %40 = arith.addf %35, %39 : vector<2x128xf32>
    %c0_24 = arith.constant 0 : index
    %c0_25 = arith.constant 0 : index
    %41 = vector.load %arg5[%c0_24, %c0_25] : memref<2x128xf32, #tpu.memory_space<vmem>>, vector<2x128xf32>
    tpu.vector_store %arg5[%c0_24, %c0_25], %40 {strides = array<i32>} : memref<2x128xf32, #tpu.memory_space<vmem>>, vector<2x128xf32>,
    %c3_i32 = arith.constant 3 : i32
    %c64_i32_26 = arith.constant 64 : i32
    %42 = arith.muli %c3_i32, %c64_i32_26 : i32
    %43 = tpu.assume_multiple %42, 64 : i32
    %c0_27 = arith.constant 0 : index
    %44 = arith.index_cast %43 : i32 to index
    %c0_28 = arith.constant 0 : index
    %45 = vector.load %arg2[%c0_27, %44, %c0_28] : memref<2x768x128xf32, #tpu.memory_space<vmem>>, vector<2x64x128xf32>
    %46 = arith.index_cast %43 : i32 to index
    %c0_29 = arith.constant 0 : index
    %47 = vector.load %arg3[%46, %c0_29] : memref<768x128xf32, #tpu.memory_space<vmem>>, vector<64x128xf32>
    %c0_30 = arith.constant 0 : index
    %c0_31 = arith.constant 0 : index
    %48 = vector.load %arg5[%c0_30, %c0_31] : memref<2x128xf32, #tpu.memory_space<vmem>>, vector<2x128xf32>
    %49 = vector.shape_cast %47 : vector<64x128xf32> to vector<1x64x128xf32>
    %50 = vector.broadcast %49 : vector<1x64x128xf32> to vector<2x64x128xf32>
    %51 = arith.mulf %45, %50 : vector<2x64x128xf32>
    %cst_32 = arith.constant dense<0.000000e+00> : vector<2x128xf32>
    %52 = vector.multi_reduction <add>, %51, %cst_32 [1] : vector<2x64x128xf32> to vector<2x128xf32>
    %53 = arith.addf %48, %52 : vector<2x128xf32>
    %c0_33 = arith.constant 0 : index
    %c0_34 = arith.constant 0 : index
    %54 = vector.load %arg5[%c0_33, %c0_34] : memref<2x128xf32, #tpu.memory_space<vmem>>, vector<2x128xf32>
    tpu.vector_store %arg5[%c0_33, %c0_34], %53 {strides = array<i32>} : memref<2x128xf32, #tpu.memory_space<vmem>>, vector<2x128xf32>,
    %c4_i32 = arith.constant 4 : i32
    %c64_i32_35 = arith.constant 64 : i32
    %55 = arith.muli %c4_i32, %c64_i32_35 : i32
    %56 = tpu.assume_multiple %55, 64 : i32
    %c0_36 = arith.constant 0 : index
    %57 = arith.index_cast %56 : i32 to index
    %c0_37 = arith.constant 0 : index
    %58 = vector.load %arg2[%c0_36, %57, %c0_37] : memref<2x768x128xf32, #tpu.memory_space<vmem>>, vector<2x64x128xf32>
    %59 = arith.index_cast %56 : i32 to index
    %c0_38 = arith.constant 0 : index
    %60 = vector.load %arg3[%59, %c0_38] : memref<768x128xf32, #tpu.memory_space<vmem>>, vector<64x128xf32>
    %c0_39 = arith.constant 0 : index
    %c0_40 = arith.constant 0 : index
    %61 = vector.load %arg5[%c0_39, %c0_40] : memref<2x128xf32, #tpu.memory_space<vmem>>, vector<2x128xf32>
    %62 = vector.shape_cast %60 : vector<64x128xf32> to vector<1x64x128xf32>
    %63 = vector.broadcast %62 : vector<1x64x128xf32> to vector<2x64x128xf32>
    %64 = arith.mulf %58, %63 : vector<2x64x128xf32>
    %cst_41 = arith.constant dense<0.000000e+00> : vector<2x128xf32>
    %65 = vector.multi_reduction <add>, %64, %cst_41 [1] : vector<2x64x128xf32> to vector<2x128xf32>
    %66 = arith.addf %61, %65 : vector<2x128xf32>
    %c0_42 = arith.constant 0 : index
    %c0_43 = arith.constant 0 : index
    %67 = vector.load %arg5[%c0_42, %c0_43] : memref<2x128xf32, #tpu.memory_space<vmem>>, vector<2x128xf32>
    tpu.vector_store %arg5[%c0_42, %c0_43], %66 {strides = array<i32>} : memref<2x128xf32, #tpu.memory_space<vmem>>, vector<2x128xf32>,
    %c5_i32 = arith.constant 5 : i32
    %c64_i32_44 = arith.constant 64 : i32
    %68 = arith.muli %c5_i32, %c64_i32_44 : i32
    %69 = tpu.assume_multiple %68, 64 : i32
    %c0_45 = arith.constant 0 : index
    %70 = arith.index_cast %69 : i32 to index
    %c0_46 = arith.constant 0 : index
    %71 = vector.load %arg2[%c0_45, %70, %c0_46] : memref<2x768x128xf32, #tpu.memory_space<vmem>>, vector<2x64x128xf32>
    %72 = arith.index_cast %69 : i32 to index
    %c0_47 = arith.constant 0 : index
    %73 = vector.load %arg3[%72, %c0_47] : memref<768x128xf32, #tpu.memory_space<vmem>>, vector<64x128xf32>
    %c0_48 = arith.constant 0 : index
    %c0_49 = arith.constant 0 : index
    %74 = vector.load %arg5[%c0_48, %c0_49] : memref<2x128xf32, #tpu.memory_space<vmem>>, vector<2x128xf32>
    %75 = vector.shape_cast %73 : vector<64x128xf32> to vector<1x64x128xf32>
    %76 = vector.broadcast %75 : vector<1x64x128xf32> to vector<2x64x128xf32>
    %77 = arith.mulf %71, %76 : vector<2x64x128xf32>
    %cst_50 = arith.constant dense<0.000000e+00> : vector<2x128xf32>
    %78 = vector.multi_reduction <add>, %77, %cst_50 [1] : vector<2x64x128xf32> to vector<2x128xf32>
    %79 = arith.addf %74, %78 : vector<2x128xf32>
    %c0_51 = arith.constant 0 : index
    %c0_52 = arith.constant 0 : index
    %80 = vector.load %arg5[%c0_51, %c0_52] : memref<2x128xf32, #tpu.memory_space<vmem>>, vector<2x128xf32>
    tpu.vector_store %arg5[%c0_51, %c0_52], %79 {strides = array<i32>} : memref<2x128xf32, #tpu.memory_space<vmem>>, vector<2x128xf32>,
    %c6_i32 = arith.constant 6 : i32
    %c64_i32_53 = arith.constant 64 : i32
    %81 = arith.muli %c6_i32, %c64_i32_53 : i32
    %82 = tpu.assume_multiple %81, 64 : i32
    %c0_54 = arith.constant 0 : index
    %83 = arith.index_cast %82 : i32 to index
    %c0_55 = arith.constant 0 : index
    %84 = vector.load %arg2[%c0_54, %83, %c0_55] : memref<2x768x128xf32, #tpu.memory_space<vmem>>, vector<2x64x128xf32>
    %85 = arith.index_cast %82 : i32 to index
    %c0_56 = arith.constant 0 : index
    %86 = vector.load %arg3[%85, %c0_56] : memref<768x128xf32, #tpu.memory_space<vmem>>, vector<64x128xf32>
    %c0_57 = arith.constant 0 : index
    %c0_58 = arith.constant 0 : index
    %87 = vector.load %arg5[%c0_57, %c0_58] : memref<2x128xf32, #tpu.memory_space<vmem>>, vector<2x128xf32>
    %88 = vector.shape_cast %86 : vector<64x128xf32> to vector<1x64x128xf32>
    %89 = vector.broadcast %88 : vector<1x64x128xf32> to vector<2x64x128xf32>
    %90 = arith.mulf %84, %89 : vector<2x64x128xf32>
    %cst_59 = arith.constant dense<0.000000e+00> : vector<2x128xf32>
    %91 = vector.multi_reduction <add>, %90, %cst_59 [1] : vector<2x64x128xf32> to vector<2x128xf32>
    %92 = arith.addf %87, %91 : vector<2x128xf32>
    %c0_60 = arith.constant 0 : index
    %c0_61 = arith.constant 0 : index
    %93 = vector.load %arg5[%c0_60, %c0_61] : memref<2x128xf32, #tpu.memory_space<vmem>>, vector<2x128xf32>
    tpu.vector_store %arg5[%c0_60, %c0_61], %92 {strides = array<i32>} : memref<2x128xf32, #tpu.memory_space<vmem>>, vector<2x128xf32>,
    %c7_i32 = arith.constant 7 : i32
    %c64_i32_62 = arith.constant 64 : i32
    %94 = arith.muli %c7_i32, %c64_i32_62 : i32
    %95 = tpu.assume_multiple %94, 64 : i32
    %c0_63 = arith.constant 0 : index
    %96 = arith.index_cast %95 : i32 to index
    %c0_64 = arith.constant 0 : index
    %97 = vector.load %arg2[%c0_63, %96, %c0_64] : memref<2x768x128xf32, #tpu.memory_space<vmem>>, vector<2x64x128xf32>
    %98 = arith.index_cast %95 : i32 to index
    %c0_65 = arith.constant 0 : index
    %99 = vector.load %arg3[%98, %c0_65] : memref<768x128xf32, #tpu.memory_space<vmem>>, vector<64x128xf32>
    %c0_66 = arith.constant 0 : index
    %c0_67 = arith.constant 0 : index
    %100 = vector.load %arg5[%c0_66, %c0_67] : memref<2x128xf32, #tpu.memory_space<vmem>>, vector<2x128xf32>
    %101 = vector.shape_cast %99 : vector<64x128xf32> to vector<1x64x128xf32>
    %102 = vector.broadcast %101 : vector<1x64x128xf32> to vector<2x64x128xf32>
    %103 = arith.mulf %97, %102 : vector<2x64x128xf32>
    %cst_68 = arith.constant dense<0.000000e+00> : vector<2x128xf32>
    %104 = vector.multi_reduction <add>, %103, %cst_68 [1] : vector<2x64x128xf32> to vector<2x128xf32>
    %105 = arith.addf %100, %104 : vector<2x128xf32>
    %c0_69 = arith.constant 0 : index
    %c0_70 = arith.constant 0 : index
    %106 = vector.load %arg5[%c0_69, %c0_70] : memref<2x128xf32, #tpu.memory_space<vmem>>, vector<2x128xf32>
    tpu.vector_store %arg5[%c0_69, %c0_70], %105 {strides = array<i32>} : memref<2x128xf32, #tpu.memory_space<vmem>>, vector<2x128xf32>,
    %c8_i32 = arith.constant 8 : i32
    %c64_i32_71 = arith.constant 64 : i32
    %107 = arith.muli %c8_i32, %c64_i32_71 : i32
    %108 = tpu.assume_multiple %107, 64 : i32
    %c0_72 = arith.constant 0 : index
    %109 = arith.index_cast %108 : i32 to index
    %c0_73 = arith.constant 0 : index
    %110 = vector.load %arg2[%c0_72, %109, %c0_73] : memref<2x768x128xf32, #tpu.memory_space<vmem>>, vector<2x64x128xf32>
    %111 = arith.index_cast %108 : i32 to index
    %c0_74 = arith.constant 0 : index
    %112 = vector.load %arg3[%111, %c0_74] : memref<768x128xf32, #tpu.memory_space<vmem>>, vector<64x128xf32>
    %c0_75 = arith.constant 0 : index
    %c0_76 = arith.constant 0 : index
    %113 = vector.load %arg5[%c0_75, %c0_76] : memref<2x128xf32, #tpu.memory_space<vmem>>, vector<2x128xf32>
    %114 = vector.shape_cast %112 : vector<64x128xf32> to vector<1x64x128xf32>
    %115 = vector.broadcast %114 : vector<1x64x128xf32> to vector<2x64x128xf32>
    %116 = arith.mulf %110, %115 : vector<2x64x128xf32>
    %cst_77 = arith.constant dense<0.000000e+00> : vector<2x128xf32>
    %117 = vector.multi_reduction <add>, %116, %cst_77 [1] : vector<2x64x128xf32> to vector<2x128xf32>
    %118 = arith.addf %113, %117 : vector<2x128xf32>
    %c0_78 = arith.constant 0 : index
    %c0_79 = arith.constant 0 : index
    %119 = vector.load %arg5[%c0_78, %c0_79] : memref<2x128xf32, #tpu.memory_space<vmem>>, vector<2x128xf32>
    tpu.vector_store %arg5[%c0_78, %c0_79], %118 {strides = array<i32>} : memref<2x128xf32, #tpu.memory_space<vmem>>, vector<2x128xf32>,
    %c9_i32 = arith.constant 9 : i32
    %c64_i32_80 = arith.constant 64 : i32
    %120 = arith.muli %c9_i32, %c64_i32_80 : i32
    %121 = tpu.assume_multiple %120, 64 : i32
    %c0_81 = arith.constant 0 : index
    %122 = arith.index_cast %121 : i32 to index
    %c0_82 = arith.constant 0 : index
    %123 = vector.load %arg2[%c0_81, %122, %c0_82] : memref<2x768x128xf32, #tpu.memory_space<vmem>>, vector<2x64x128xf32>
    %124 = arith.index_cast %121 : i32 to index
    %c0_83 = arith.constant 0 : index
    %125 = vector.load %arg3[%124, %c0_83] : memref<768x128xf32, #tpu.memory_space<vmem>>, vector<64x128xf32>
    %c0_84 = arith.constant 0 : index
    %c0_85 = arith.constant 0 : index
    %126 = vector.load %arg5[%c0_84, %c0_85] : memref<2x128xf32, #tpu.memory_space<vmem>>, vector<2x128xf32>
    %127 = vector.shape_cast %125 : vector<64x128xf32> to vector<1x64x128xf32>
    %128 = vector.broadcast %127 : vector<1x64x128xf32> to vector<2x64x128xf32>
    %129 = arith.mulf %123, %128 : vector<2x64x128xf32>
    %cst_86 = arith.constant dense<0.000000e+00> : vector<2x128xf32>
    %130 = vector.multi_reduction <add>, %129, %cst_86 [1] : vector<2x64x128xf32> to vector<2x128xf32>
    %131 = arith.addf %126, %130 : vector<2x128xf32>
    %c0_87 = arith.constant 0 : index
    %c0_88 = arith.constant 0 : index
    %132 = vector.load %arg5[%c0_87, %c0_88] : memref<2x128xf32, #tpu.memory_space<vmem>>, vector<2x128xf32>
    tpu.vector_store %arg5[%c0_87, %c0_88], %131 {strides = array<i32>} : memref<2x128xf32, #tpu.memory_space<vmem>>, vector<2x128xf32>,
    %c10_i32 = arith.constant 10 : i32
    %c64_i32_89 = arith.constant 64 : i32
    %133 = arith.muli %c10_i32, %c64_i32_89 : i32
    %134 = tpu.assume_multiple %133, 64 : i32
    %c0_90 = arith.constant 0 : index
    %135 = arith.index_cast %134 : i32 to index
    %c0_91 = arith.constant 0 : index
    %136 = vector.load %arg2[%c0_90, %135, %c0_91] : memref<2x768x128xf32, #tpu.memory_space<vmem>>, vector<2x64x128xf32>
    %137 = arith.index_cast %134 : i32 to index
    %c0_92 = arith.constant 0 : index
    %138 = vector.load %arg3[%137, %c0_92] : memref<768x128xf32, #tpu.memory_space<vmem>>, vector<64x128xf32>
    %c0_93 = arith.constant 0 : index
    %c0_94 = arith.constant 0 : index
    %139 = vector.load %arg5[%c0_93, %c0_94] : memref<2x128xf32, #tpu.memory_space<vmem>>, vector<2x128xf32>
    %140 = vector.shape_cast %138 : vector<64x128xf32> to vector<1x64x128xf32>
    %141 = vector.broadcast %140 : vector<1x64x128xf32> to vector<2x64x128xf32>
    %142 = arith.mulf %136, %141 : vector<2x64x128xf32>
    %cst_95 = arith.constant dense<0.000000e+00> : vector<2x128xf32>
    %143 = vector.multi_reduction <add>, %142, %cst_95 [1] : vector<2x64x128xf32> to vector<2x128xf32>
    %144 = arith.addf %139, %143 : vector<2x128xf32>
    %c0_96 = arith.constant 0 : index
    %c0_97 = arith.constant 0 : index
    %145 = vector.load %arg5[%c0_96, %c0_97] : memref<2x128xf32, #tpu.memory_space<vmem>>, vector<2x128xf32>
    tpu.vector_store %arg5[%c0_96, %c0_97], %144 {strides = array<i32>} : memref<2x128xf32, #tpu.memory_space<vmem>>, vector<2x128xf32>,
    %c11_i32 = arith.constant 11 : i32
    %c64_i32_98 = arith.constant 64 : i32
    %146 = arith.muli %c11_i32, %c64_i32_98 : i32
    %147 = tpu.assume_multiple %146, 64 : i32
    %c0_99 = arith.constant 0 : index
    %148 = arith.index_cast %147 : i32 to index
    %c0_100 = arith.constant 0 : index
    %149 = vector.load %arg2[%c0_99, %148, %c0_100] : memref<2x768x128xf32, #tpu.memory_space<vmem>>, vector<2x64x128xf32>
    %150 = arith.index_cast %147 : i32 to index
    %c0_101 = arith.constant 0 : index
    %151 = vector.load %arg3[%150, %c0_101] : memref<768x128xf32, #tpu.memory_space<vmem>>, vector<64x128xf32>
    %c0_102 = arith.constant 0 : index
    %c0_103 = arith.constant 0 : index
    %152 = vector.load %arg5[%c0_102, %c0_103] : memref<2x128xf32, #tpu.memory_space<vmem>>, vector<2x128xf32>
    %153 = vector.shape_cast %151 : vector<64x128xf32> to vector<1x64x128xf32>
    %154 = vector.broadcast %153 : vector<1x64x128xf32> to vector<2x64x128xf32>
    %155 = arith.mulf %149, %154 : vector<2x64x128xf32>
    %cst_104 = arith.constant dense<0.000000e+00> : vector<2x128xf32>
    %156 = vector.multi_reduction <add>, %155, %cst_104 [1] : vector<2x64x128xf32> to vector<2x128xf32>
    %157 = arith.addf %152, %156 : vector<2x128xf32>
    %c0_105 = arith.constant 0 : index
    %c0_106 = arith.constant 0 : index
    %158 = vector.load %arg5[%c0_105, %c0_106] : memref<2x128xf32, #tpu.memory_space<vmem>>, vector<2x128xf32>
    tpu.vector_store %arg5[%c0_105, %c0_106], %157 {strides = array<i32>} : memref<2x128xf32, #tpu.memory_space<vmem>>, vector<2x128xf32>,
    %c12_i32 = arith.constant 12 : i32
    %c1_i32_107 = arith.constant 1 : i32
    %159 = arith.cmpi eq, %arg0, %c1_i32_107 : i32
    %160 = arith.extui %159 : i1 to i32
    %c0_i32_108 = arith.constant 0 : i32
    %161 = arith.cmpi ne, %160, %c0_i32_108 : i32
    scf.if %161 {
      %c0_109 = arith.constant 0 : index
      %c0_110 = arith.constant 0 : index
      %162 = vector.load %arg5[%c0_109, %c0_110] : memref<2x128xf32, #tpu.memory_space<vmem>>, vector<2x128xf32>
      %cst_111 = arith.constant dense<0.000000e+00> : vector<2xf32>
      %163 = vector.multi_reduction <add>, %162, %cst_111 [1] : vector<2x128xf32> to vector<2xf32>
      %164 = vector.shape_cast %163 : vector<2xf32> to vector<2x1xf32>
      %c0_112 = arith.constant 0 : index
      %165 = memref.load %arg1[%c0_112] : memref<1xf32, #tpu.memory_space<smem>>
      %166 = vector.broadcast %165 : f32 to vector<2x1xf32>
      %167 = arith.addf %164, %166 : vector<2x1xf32>
      %c0_113 = arith.constant 0 : index
      %c0_114 = arith.constant 0 : index
      %168 = vector.load %arg4[%c0_113, %c0_114] : memref<2x1xf32, #tpu.memory_space<vmem>>, vector<2x1xf32>
      tpu.vector_store %arg4[%c0_113, %c0_114], %167 {strides = array<i32>} : memref<2x1xf32, #tpu.memory_space<vmem>>, vector<2x1xf32>,
    } else {
    }
    return
  }
  func.func @transform_0(%arg0: i32) -> i32 {
    %c0_i32 = arith.constant 0 : i32
    %c0_i32_0 = arith.constant 0 : i32
    return %c0_i32 : i32
  }
  func.func @transform_1(%arg0: i32) -> (i32, i32, i32) {
    %c0_i32 = arith.constant 0 : i32
    %c0_i32_0 = arith.constant 0 : i32
    %c0_i32_1 = arith.constant 0 : i32
    return %c0_i32, %arg0, %c0_i32_0 : i32, i32, i32
  }
  func.func @transform_2(%arg0: i32) -> (i32, i32) {
    %c0_i32 = arith.constant 0 : i32
    %c0_i32_0 = arith.constant 0 : i32
    return %arg0, %c0_i32 : i32, i32
  }
  func.func @transform_3(%arg0: i32) -> (i32, i32) {
    %c0_i32 = arith.constant 0 : i32
    %c0_i32_0 = arith.constant 0 : i32
    %c0_i32_1 = arith.constant 0 : i32
    return %c0_i32, %c0_i32_0 : i32, i32
  }
}

</mosaic_0001>

<llo_original>
// kernel: tpu_custom_call.1
$region0: #{tpu_custom_call.1}
  #allocation0 [shape = 'u32[]', space=smem, size = 0x4, offset = 0x4, fixed_abs, tag = 'smem constant byte address 0x4 - core index']
  #allocation1 [shape = 'u32[144,128]{1,0:T(1,128)}', space=vmem, size = 0x12000, scoped, tag = 'internal scratch']
  #allocation2 [shape = 'f32[2,128]{1,0:T(2,128)}', space=vmem, size = 0x400, scoped, tag = 'scratch operand']
  #allocation3 [shape = 'f32[1]{0:T(128)S(6)}', space=smem, size = 0x200, scoped, tag = 'scoped memory for tpu_custom_call.1']
  #allocation8 [shape = 's32[]', space=sflag, size = 0x4, offset = 0, fixed_abs, tag = 'sflag constant byte address 0x0 - dummy sync flag']
  %s0 = inlined_call_operand.<no memory space> [shape: f32[1], index: 0, kind: input, shape index: {}]
  %s1 = inlined_call_operand.hbm [shape: f32[2,1536,128], index: 1, kind: input, shape index: {}]
  %s2 = inlined_call_operand.hbm [shape: f32[1536,128], index: 2, kind: input, shape index: {}]
  %s3 = inlined_call_operand.vmem [shape: f32[2,1], index: 3, kind: output, shape index: {}]
  %s4 = sld [smem:[#allocation0]]
  $region61: #{tpu_custom_call.1} parent=0
    _
  %s6 = ssub.s32 1, %s4
  %s7 = scalar_select 0, %s6, %s4
  %8 = sst [smem:[#allocation3]] %s0
  $region1: #{tpu_custom_call.1} parent=0
    #allocation4 [shape = 'u8[1572864]{0}', space=vmem, size = 0x180000, scoped, tag = 'input window, operand 1']
    #allocation5 [shape = 's32[2]{0}', space=sflag, size = 0x8, scoped, tag = 'scoped memory for tpu_custom_call.1']
    #allocation6 [shape = 'u8[786432]{0}', space=vmem, size = 0xc0000, scoped, tag = 'input window, operand 2']
    #allocation7 [shape = 's32[2]{0}', space=sflag, size = 0x8, scoped, tag = 'scoped memory for tpu_custom_call.1']
    %9 = vsyncpa [#allocation5], 0
    %s10 = scalar_lea.sflag [#allocation5], 1
    %11 = vsyncpa %s10, 0
    %12 = vsyncpa [#allocation7], 0
    %s13 = scalar_lea.sflag [#allocation7], 1
    %14 = vsyncpa %s13, 0
    loop: start=0, step=1, limit=4
    $region2: #{tpu_custom_call.1} parent=1 // loop_pre_header
      _
    $region3: #{tpu_custom_call.1} parent=1 // loop_header
      %s16 = sphi 0, %s20
      %p17 = scmp.ge.s32.totalorder %s16, 4
      %s24 = sphi 0, %s24
      %s26 = sphi 0, %s24
      %s27 = sphi 0, %s26
      %s41 = sphi 0, %s27
      %s47 = sphi 0, %s49
      %s50 = sphi 0, %s47
      %s51 = sphi 0, %s50
      %s67 = sphi 0, %s51
      %s73 = sphi 0, %s75
      %s76 = sphi 0, %s73
      %s77 = sphi 0, %s76
      %s93 = sphi 0, %s77
      %s97 = sphi 0, %s97
      %s99 = sphi 0, %s97
      %s100 = sphi 0, %s99
      %s114 = sphi 0, %s100
    $region4: #{tpu_custom_call.1} parent=1 // loop_header_branch
      %19 = sbr.rel (%p17) target = $region8
    $region5: #{tpu_custom_call.1} parent=1 // loop_body
      %s21 = ssub.s32 %s16, 1
      %s22 = ssub.s32 %s16, 2
      %s23 = sadd.s32 %s16, 1
      %s25 = sadd.s32 %s24, 1
      %p28 = scmp.eq.s32.totalorder %s16, 1
      %p29 = scmp.ne.s32.totalorder %s24, %s26
      %p30 = scmp.eq.s32.totalorder %s16, 0
      %p31 = por %p29, %p30
      %p32 = scmp.ne.s32.totalorder %s24, %s26
      %p33 = scmp.eq.s32.totalorder %s21, 1
      %p34 = por %p32, %p33
      %p35 = scmp.ne.s32.totalorder %s26, %s27
      %p36 = scmp.eq.s32.totalorder %s21, 0
      %p37 = por %p35, %p36
      %p38 = scmp.ne.s32.totalorder %s26, %s27
      %p39 = scmp.eq.s32.totalorder %s22, 1
      %p40 = por %p38, %p39
      %p42 = scmp.ne.s32.totalorder %s27, %s41
      %p43 = scmp.eq.s32.totalorder %s22, 0
      %p44 = por %p42, %p43
      %s45 = ssub.s32 %s16, %s23
      %p46 = scmp.eq.s32.totalorder %s45, 0
      %s48 = sadd.s32 %s47, 1
      %s49 = scalar_select %p46, %s47, %s48
      %p52 = pneg %p46
      %p53 = scmp.eq.s32.totalorder %s16, 1
      %p54 = por %p52, %p53
      %p55 = scmp.ne.s32.totalorder %s47, %s50
      %p56 = scmp.eq.s32.totalorder %s16, 0
      %p57 = por %p55, %p56
      %p58 = scmp.ne.s32.totalorder %s47, %s50
      %p59 = scmp.eq.s32.totalorder %s21, 1
      %p60 = por %p58, %p59
      %p61 = scmp.ne.s32.totalorder %s50, %s51
      %p62 = scmp.eq.s32.totalorder %s21, 0
      %p63 = por %p61, %p62
      %p64 = scmp.ne.s32.totalorder %s50, %s51
      %p65 = scmp.eq.s32.totalorder %s22, 1
      %p66 = por %p64, %p65
      %p68 = scmp.ne.s32.totalorder %s51, %s67
      %p69 = scmp.eq.s32.totalorder %s22, 0
      %p70 = por %p68, %p69
      %s71 = ssub.s32 %s16, %s23
      %p72 = scmp.eq.s32.totalorder %s71, 0
      %s74 = sadd.s32 %s73, 1
      %s75 = scalar_select %p72, %s73, %s74
      %p78 = pneg %p72
      %p79 = scmp.eq.s32.totalorder %s16, 1
      %p80 = por %p78, %p79
      %p81 = scmp.ne.s32.totalorder %s73, %s76
      %p82 = scmp.eq.s32.totalorder %s16, 0
      %p83 = por %p81, %p82
      %p84 = scmp.ne.s32.totalorder %s73, %s76
      %p85 = scmp.eq.s32.totalorder %s21, 1
      %p86 = por %p84, %p85
      %p87 = scmp.ne.s32.totalorder %s76, %s77
      %p88 = scmp.eq.s32.totalorder %s21, 0
      %p89 = por %p87, %p88
      %p90 = scmp.ne.s32.totalorder %s76, %s77
      %p91 = scmp.eq.s32.totalorder %s22, 1
      %p92 = por %p90, %p91
      %p94 = scmp.ne.s32.totalorder %s77, %s93
      %p95 = scmp.eq.s32.totalorder %s22, 0
      %p96 = por %p94, %p95
      %s98 = sadd.s32 %s97, 1
      %p101 = scmp.eq.s32.totalorder %s16, 1
      %p102 = scmp.ne.s32.totalorder %s97, %s99
      %p103 = scmp.eq.s32.totalorder %s16, 0
      %p104 = por %p102, %p103
      %p105 = scmp.ne.s32.totalorder %s97, %s99
      %p106 = scmp.eq.s32.totalorder %s21, 1
      %p107 = por %p105, %p106
      %p108 = scmp.ne.s32.totalorder %s99, %s100
      %p109 = scmp.eq.s32.totalorder %s21, 0
      %p110 = por %p108, %p109
      %p111 = scmp.ne.s32.totalorder %s99, %s100
      %p112 = scmp.eq.s32.totalorder %s22, 1
      %p113 = por %p111, %p112
      %p115 = scmp.ne.s32.totalorder %s100, %s114
      %p116 = scmp.eq.s32.totalorder %s22, 0
      %p117 = por %p115, %p116
      %p118 = scmp.le.s32.totalorder 1, %s16
      %p119 = scmp.lt.s32.totalorder %s16, 3
      %p120 = pnand %p118, %p119
      %p121 = pneg %p120
      // Predicated region
      $region9: #{tpu_custom_call.1} parent=5 // pred_check
        _
      $region10: #{tpu_custom_call.1} parent=5 // pred_check_branch
        %123 = sbr.rel (%p120) target = $region12
      $region11: #{tpu_custom_call.1} parent=5 // pred_region
        %s124 = ssub.s32 %s16, 1
        // Predicated region
        $region13: #{tpu_custom_call.1} parent=11 // pred_check
          %p125 = pneg %p37
        $region14: #{tpu_custom_call.1} parent=11 // pred_check_branch
          %127 = sbr.rel (%p125) target = $region16
        $region15: #{tpu_custom_call.1} parent=11 // pred_region
          _
        $region16: #{tpu_custom_call.1} parent=11 // pred_fallthru
          _
      $region12: #{tpu_custom_call.1} parent=5 // pred_fallthru
        _
      %p128 = scmp.lt.s32.totalorder %s16, 2
      // Predicated region
      $region17: #{tpu_custom_call.1} parent=5 // pred_check
        %p129 = pneg %p128
      $region18: #{tpu_custom_call.1} parent=5 // pred_check_branch
        %131 = sbr.rel (%p129) target = $region20
      $region19: #{tpu_custom_call.1} parent=5 // pred_region
        // Predicated region
        $region21: #{tpu_custom_call.1} parent=19 // pred_check
          %p132 = pneg %p57
        $region22: #{tpu_custom_call.1} parent=19 // pred_check_branch
          %134 = sbr.rel (%p132) target = $region24
        $region23: #{tpu_custom_call.1} parent=19 // pred_region
          #allocation9 [shape = 'u32[6]{0}', space=smem, size = 0x18, scoped, tag = 'DMA stride descriptor']
          %s135 = sand.u32 %s47, 1
          %s136 = scalar_lea.sflag [#allocation5], %s135
          %s137 = sand.u32 %s47, 1
          %s138 = smul.addr %s137, 1536
          %s139 = scalar_lea.vmem [#allocation4], %s138
          %s140 = smul.u32 96, %s16
          %s142 = ssub.s32 24576, 24576
          %143 = vsyncadd %s136, %s142
          %s144 = smul.addr %s140, 128
          %s145 = scalar_lea.hbm %s1, %s144
          %s147 = sshll.u32 1, 14
          %s148 = sxor.u32 4294967295, %s147
          %s150 = sld [smem:[#allocation0]]
          %s151 = sadd.s32 2, %s150
          %s153 = sshll.u32 7, 26
          %s154 = sxor.u32 4294967295, %s153
          %s155 = sand.u32 0, %s154
          %s156 = sshll.u32 %s151, 26
          %s157 = sor.u32 %s155, %s156
          %s158 = sshll.u32 %s139, 4
          %s159 = int_to_ptr.vmem [resolvable:$true] %s158
          %165 = sst [smem:[#allocation9]] 24576
          %s166 = scalar_lea.smem [#allocation9], 1
          %167 = sst [smem:[%s166]] 12288
          %s168 = scalar_lea.smem [#allocation9], 2
          %169 = sst [smem:[%s168]] 96
          %s170 = scalar_lea.smem [#allocation9], 3
          %171 = sst [smem:[%s170]] 128
          %s172 = scalar_lea.smem [#allocation9], 4
          %173 = sst [smem:[%s172]] 128
          %s174 = scalar_lea.smem [#allocation9], 5
          %175 = sst [smem:[%s174]] 8
          %177 = dma.general %s145, 24576, %s159, %s136, [#allocation8], [#allocation9], %s157, 0
        $region24: #{tpu_custom_call.1} parent=19 // pred_fallthru
          _
        // Predicated region
        $region25: #{tpu_custom_call.1} parent=19 // pred_check
          %p178 = pneg %p83
        $region26: #{tpu_custom_call.1} parent=19 // pred_check_branch
          %180 = sbr.rel (%p178) target = $region28
        $region27: #{tpu_custom_call.1} parent=19 // pred_region
          %s181 = sand.u32 %s73, 1
          %s182 = scalar_lea.sflag [#allocation7], %s181
          %s183 = sand.u32 %s73, 1
          %s184 = smul.addr %s183, 768
          %s185 = scalar_lea.vmem [#allocation6], %s184
          %s186 = smul.u32 96, %s16
          %s188 = ssub.s32 12288, 12288
          %189 = vsyncadd %s182, %s188
          %s190 = smul.addr %s186, 128
          %s191 = scalar_lea.hbm %s2, %s190
          %s192 = sshll.u32 %s185, 4
          %s193 = int_to_ptr.vmem [resolvable:$true] %s192
          %198 = dma.hbm_to_vmem [thread:$0]  %s191, 12288, %s193, %s182, 128, 128, 8
        $region28: #{tpu_custom_call.1} parent=19 // pred_fallthru
          _
      $region20: #{tpu_custom_call.1} parent=5 // pred_fallthru
        _
      %p199 = scmp.le.s32.totalorder 1, %s16
      %p200 = scmp.lt.s32.totalorder %s16, 3
      %p201 = pnand %p199, %p200
      %p202 = pneg %p201
      // Predicated region
      $region29: #{tpu_custom_call.1} parent=5 // pred_check
        _
      $region30: #{tpu_custom_call.1} parent=5 // pred_check_branch
        %204 = sbr.rel (%p201) target = $region32
      $region31: #{tpu_custom_call.1} parent=5 // pred_region
        %s205 = ssub.s32 %s16, 1
        %s206 = sand.u32 %s50, 1
        %s207 = scalar_lea.sflag [#allocation5], %s206
        %s208 = sand.u32 %s50, 1
        %s209 = smul.addr %s208, 1536
        %s210 = scalar_lea.vmem [#allocation4], %s209
        // Predicated region
        $region33: #{tpu_custom_call.1} parent=31 // pred_check
          %p211 = pneg %p63
        $region34: #{tpu_custom_call.1} parent=31 // pred_check_branch
          %213 = sbr.rel (%p211) target = $region36
        $region35: #{tpu_custom_call.1} parent=31 // pred_region
          %214 = dma.done %s207, 24576
        $region36: #{tpu_custom_call.1} parent=31 // pred_fallthru
          _
        %s215 = sand.u32 %s76, 1
        %s216 = scalar_lea.sflag [#allocation7], %s215
        %s217 = sand.u32 %s76, 1
        %s218 = smul.addr %s217, 768
        %s219 = scalar_lea.vmem [#allocation6], %s218
        // Predicated region
        $region37: #{tpu_custom_call.1} parent=31 // pred_check
          %p220 = pneg %p89
        $region38: #{tpu_custom_call.1} parent=31 // pred_check_branch
          %222 = sbr.rel (%p220) target = $region40
        $region39: #{tpu_custom_call.1} parent=31 // pred_region
          %223 = dma.done %s216, 12288
        $region40: #{tpu_custom_call.1} parent=31 // pred_fallthru
          _
        %p224 = pneg %p37
        %p225 = pneg %p34
        %s226 = sand.u32 %s50, 1
        %s227 = scalar_lea.sflag [#allocation5], %s226
        %s228 = sand.u32 %s50, 1
        %s229 = smul.addr %s228, 1536
        %s230 = scalar_lea.vmem [#allocation4], %s229
        %p231 = pneg %p63
        %p232 = pneg %p60
        %s233 = sand.u32 %s76, 1
        %s234 = scalar_lea.sflag [#allocation7], %s233
        %s235 = sand.u32 %s76, 1
        %s236 = smul.addr %s235, 768
        %s237 = scalar_lea.vmem [#allocation6], %s236
        %p238 = pneg %p89
        %p239 = pneg %p86
        %p240 = pneg %p110
        %p241 = pneg %p107
        %s242 = smul.u32 96, %s21
        %s243 = smul.u32 96, %s21
        %p244 = scmp.eq.s32.totalorder %s21, 0
        // Predicated region
        $region41: #{tpu_custom_call.1} parent=31 // pred_check
          %p245 = pneg %p244
        $region42: #{tpu_custom_call.1} parent=31 // pred_check_branch
          %247 = sbr.rel (%p245) target = $region44
        $region43: #{tpu_custom_call.1} parent=31 // pred_region
          %248 = vst [vmem:[#allocation2] sm:$0x3] 0.0
        $region44: #{tpu_custom_call.1} parent=31 // pred_fallthru
          _
        %v249 = vld [vmem:[%s210] sm:$0xff]
        %v250 = vld [vmem:[%s210 + $0x8] sm:$0xff]
        %v251 = vld [vmem:[%s210 + $0x10] sm:$0xff]
        %v252 = vld [vmem:[%s210 + $0x18] sm:$0xff]
        %v253 = vld [vmem:[%s210 + $0x20] sm:$0xff]
        %v254 = vld [vmem:[%s210 + $0x28] sm:$0xff]
        %v255 = vld [vmem:[%s210 + $0x30] sm:$0xff]
        %v256 = vld [vmem:[%s210 + $0x38] sm:$0xff]
        %v257 = vld [vmem:[%s210 + $0x300] sm:$0xff]
        %v258 = vld [vmem:[%s210 + $0x308] sm:$0xff]
        %v259 = vld [vmem:[%s210 + $0x310] sm:$0xff]
        %v260 = vld [vmem:[%s210 + $0x318] sm:$0xff]
        %v261 = vld [vmem:[%s210 + $0x320] sm:$0xff]
        %v262 = vld [vmem:[%s210 + $0x328] sm:$0xff]
        %v263 = vld [vmem:[%s210 + $0x330] sm:$0xff]
        %v264 = vld [vmem:[%s210 + $0x338] sm:$0xff]
        %v265 = vld [vmem:[%s219] sm:$0xff]
        %v266 = vld [vmem:[%s219 + $0x8] sm:$0xff]
        %v267 = vld [vmem:[%s219 + $0x10] sm:$0xff]
        %v268 = vld [vmem:[%s219 + $0x18] sm:$0xff]
        %v269 = vld [vmem:[%s219 + $0x20] sm:$0xff]
        %v270 = vld [vmem:[%s219 + $0x28] sm:$0xff]
        %v271 = vld [vmem:[%s219 + $0x30] sm:$0xff]
        %v272 = vld [vmem:[%s219 + $0x38] sm:$0xff]
        %v273 = vld [vmem:[#allocation2] sm:$0x3]
        %v274 = vmul.f32 %v249, %v265
        %v275 = vmul.f32 %v250, %v266
        %v276 = vmul.f32 %v251, %v267
        %v277 = vmul.f32 %v252, %v268
        %v278 = vmul.f32 %v253, %v269
        %v279 = vmul.f32 %v254, %v270
        %v280 = vmul.f32 %v255, %v271
        %v281 = vmul.f32 %v256, %v272
        %v282 = vmul.f32 %v257, %v265
        %v283 = vmul.f32 %v258, %v266
        %v284 = vmul.f32 %v259, %v267
        %v285 = vmul.f32 %v260, %v268
        %v286 = vmul.f32 %v261, %v269
        %v287 = vmul.f32 %v262, %v270
        %v288 = vmul.f32 %v263, %v271
        %v289 = vmul.f32 %v264, %v272
        %v290 = vadd.f32 %v274, %v275
        %v291 = vadd.f32 %v290, %v276
        %v292 = vadd.f32 %v291, %v277
        %v293 = vadd.f32 %v292, %v278
        %v294 = vadd.f32 %v293, %v279
        %v295 = vadd.f32 %v294, %v280
        %v296 = vadd.f32 %v295, %v281
        %v297 = vrot.slane %v296, 4
        %v298 = vadd.f32 %v296, %v297
        %v299 = vrot.slane %v298, 2
        %v300 = vadd.f32 %v298, %v299
        %v301 = vrot.slane %v300, 1
        %v302 = vadd.f32 %v300, %v301
        %v303 = vadd.f32 %v282, %v283
        %v304 = vadd.f32 %v303, %v284
        %v305 = vadd.f32 %v304, %v285
        %v306 = vadd.f32 %v305, %v286
        %v307 = vadd.f32 %v306, %v287
        %v308 = vadd.f32 %v307, %v288
        %v309 = vadd.f32 %v308, %v289
        %v310 = vrot.slane %v309, 4
        %v311 = vadd.f32 %v309, %v310
        %v312 = vrot.slane %v311, 2
        %v313 = vadd.f32 %v311, %v312
        %v314 = vrot.slane %v313, 1
        %v315 = vadd.f32 %v313, %v314
        %vm318 = vcmask 1041409
        %v319 = vsel %vm318, %v315, %v302
        %v321 = vadd.f32 %v273, %v319
        %322 = vst [vmem:[#allocation2] sm:$0x3] %v321
        %s323 = scalar_lea.vmem %s210, 64 [#allocation4]
        %v324 = vld [vmem:[%s323] sm:$0xff]
        %v325 = vld [vmem:[%s323 + $0x8] sm:$0xff]
        %v326 = vld [vmem:[%s323 + $0x10] sm:$0xff]
        %v327 = vld [vmem:[%s323 + $0x18] sm:$0xff]
        %v328 = vld [vmem:[%s323 + $0x20] sm:$0xff]
        %v329 = vld [vmem:[%s323 + $0x28] sm:$0xff]
        %v330 = vld [vmem:[%s323 + $0x30] sm:$0xff]
        %v331 = vld [vmem:[%s323 + $0x38] sm:$0xff]
        %v332 = vld [vmem:[%s323 + $0x300] sm:$0xff]
        %v333 = vld [vmem:[%s323 + $0x308] sm:$0xff]
        %v334 = vld [vmem:[%s323 + $0x310] sm:$0xff]
        %v335 = vld [vmem:[%s323 + $0x318] sm:$0xff]
        %v336 = vld [vmem:[%s323 + $0x320] sm:$0xff]
        %v337 = vld [vmem:[%s323 + $0x328] sm:$0xff]
        %v338 = vld [vmem:[%s323 + $0x330] sm:$0xff]
        %v339 = vld [vmem:[%s323 + $0x338] sm:$0xff]
        %s340 = scalar_lea.vmem %s219, 64 [#allocation6]
        %v341 = vld [vmem:[%s340] sm:$0xff]
        %v342 = vld [vmem:[%s340 + $0x8] sm:$0xff]
        %v343 = vld [vmem:[%s340 + $0x10] sm:$0xff]
        %v344 = vld [vmem:[%s340 + $0x18] sm:$0xff]
        %v345 = vld [vmem:[%s340 + $0x20] sm:$0xff]
        %v346 = vld [vmem:[%s340 + $0x28] sm:$0xff]
        %v347 = vld [vmem:[%s340 + $0x30] sm:$0xff]
        %v348 = vld [vmem:[%s340 + $0x38] sm:$0xff]
        %v349 = vld [vmem:[#allocation2] sm:$0x3]
        %v350 = vmul.f32 %v324, %v341
        %v351 = vmul.f32 %v325, %v342
        %v352 = vmul.f32 %v326, %v343
        %v353 = vmul.f32 %v327, %v344
        %v354 = vmul.f32 %v328, %v345
        %v355 = vmul.f32 %v329, %v346
        %v356 = vmul.f32 %v330, %v347
        %v357 = vmul.f32 %v331, %v348
        %v358 = vmul.f32 %v332, %v341
        %v359 = vmul.f32 %v333, %v342
        %v360 = vmul.f32 %v334, %v343
        %v361 = vmul.f32 %v335, %v344
        %v362 = vmul.f32 %v336, %v345
        %v363 = vmul.f32 %v337, %v346
        %v364 = vmul.f32 %v338, %v347
        %v365 = vmul.f32 %v339, %v348
        %v366 = vadd.f32 %v350, %v351
        %v367 = vadd.f32 %v366, %v352
        %v368 = vadd.f32 %v367, %v353
        %v369 = vadd.f32 %v368, %v354
        %v370 = vadd.f32 %v369, %v355
        %v371 = vadd.f32 %v370, %v356
        %v372 = vadd.f32 %v371, %v357
        %v373 = vrot.slane %v372, 4
        %v374 = vadd.f32 %v372, %v373
        %v375 = vrot.slane %v374, 2
        %v376 = vadd.f32 %v374, %v375
        %v377 = vrot.slane %v376, 1
        %v378 = vadd.f32 %v376, %v377
        %v379 = vadd.f32 %v358, %v359
        %v380 = vadd.f32 %v379, %v360
        %v381 = vadd.f32 %v380, %v361
        %v382 = vadd.f32 %v381, %v362
        %v383 = vadd.f32 %v382, %v363
        %v384 = vadd.f32 %v383, %v364
        %v385 = vadd.f32 %v384, %v365
        %v386 = vrot.slane %v385, 4
        %v387 = vadd.f32 %v385, %v386
        %v388 = vrot.slane %v387, 2
        %v389 = vadd.f32 %v387, %v388
        %v390 = vrot.slane %v389, 1
        %v391 = vadd.f32 %v389, %v390
        %v394 = vsel %vm318, %v391, %v378
        %v396 = vadd.f32 %v349, %v394
        %397 = vst [vmem:[#allocation2] sm:$0x3] %v396
        %s398 = scalar_lea.vmem %s210, 128 [#allocation4]
        %v399 = vld [vmem:[%s398] sm:$0xff]
        %v400 = vld [vmem:[%s398 + $0x8] sm:$0xff]
        %v401 = vld [vmem:[%s398 + $0x10] sm:$0xff]
        %v402 = vld [vmem:[%s398 + $0x18] sm:$0xff]
        %v403 = vld [vmem:[%s398 + $0x20] sm:$0xff]
        %v404 = vld [vmem:[%s398 + $0x28] sm:$0xff]
        %v405 = vld [vmem:[%s398 + $0x30] sm:$0xff]
        %v406 = vld [vmem:[%s398 + $0x38] sm:$0xff]
        %v407 = vld [vmem:[%s398 + $0x300] sm:$0xff]
        %v408 = vld [vmem:[%s398 + $0x308] sm:$0xff]
        %v409 = vld [vmem:[%s398 + $0x310] sm:$0xff]
        %v410 = vld [vmem:[%s398 + $0x318] sm:$0xff]
        %v411 = vld [vmem:[%s398 + $0x320] sm:$0xff]
        %v412 = vld [vmem:[%s398 + $0x328] sm:$0xff]
        %v413 = vld [vmem:[%s398 + $0x330] sm:$0xff]
        %v414 = vld [vmem:[%s398 + $0x338] sm:$0xff]
        %s415 = scalar_lea.vmem %s219, 128 [#allocation6]
        %v416 = vld [vmem:[%s415] sm:$0xff]
        %v417 = vld [vmem:[%s415 + $0x8] sm:$0xff]
        %v418 = vld [vmem:[%s415 + $0x10] sm:$0xff]
        %v419 = vld [vmem:[%s415 + $0x18] sm:$0xff]
        %v420 = vld [vmem:[%s415 + $0x20] sm:$0xff]
        %v421 = vld [vmem:[%s415 + $0x28] sm:$0xff]
        %v422 = vld [vmem:[%s415 + $0x30] sm:$0xff]
        %v423 = vld [vmem:[%s415 + $0x38] sm:$0xff]
        %v424 = vld [vmem:[#allocation2] sm:$0x3]
        %v425 = vmul.f32 %v399, %v416
        %v426 = vmul.f32 %v400, %v417
        %v427 = vmul.f32 %v401, %v418
        %v428 = vmul.f32 %v402, %v419
        %v429 = vmul.f32 %v403, %v420
        %v430 = vmul.f32 %v404, %v421
        %v431 = vmul.f32 %v405, %v422
        %v432 = vmul.f32 %v406, %v423
        %v433 = vmul.f32 %v407, %v416
        %v434 = vmul.f32 %v408, %v417
        %v435 = vmul.f32 %v409, %v418
        %v436 = vmul.f32 %v410, %v419
        %v437 = vmul.f32 %v411, %v420
        %v438 = vmul.f32 %v412, %v421
        %v439 = vmul.f32 %v413, %v422
        %v440 = vmul.f32 %v414, %v423
        %v441 = vadd.f32 %v425, %v426
        %v442 = vadd.f32 %v441, %v427
        %v443 = vadd.f32 %v442, %v428
        %v444 = vadd.f32 %v443, %v429
        %v445 = vadd.f32 %v444, %v430
        %v446 = vadd.f32 %v445, %v431
        %v447 = vadd.f32 %v446, %v432
        %v448 = vrot.slane %v447, 4
        %v449 = vadd.f32 %v447, %v448
        %v450 = vrot.slane %v449, 2
        %v451 = vadd.f32 %v449, %v450
        %v452 = vrot.slane %v451, 1
        %v453 = vadd.f32 %v451, %v452
        %v454 = vadd.f32 %v433, %v434
        %v455 = vadd.f32 %v454, %v435
        %v456 = vadd.f32 %v455, %v436
        %v457 = vadd.f32 %v456, %v437
        %v458 = vadd.f32 %v457, %v438
        %v459 = vadd.f32 %v458, %v439
        %v460 = vadd.f32 %v459, %v440
        %v461 = vrot.slane %v460, 4
        %v462 = vadd.f32 %v460, %v461
        %v463 = vrot.slane %v462, 2
        %v464 = vadd.f32 %v462, %v463
        %v465 = vrot.slane %v464, 1
        %v466 = vadd.f32 %v464, %v465
        %v469 = vsel %vm318, %v466, %v453
        %v471 = vadd.f32 %v424, %v469
        %472 = vst [vmem:[#allocation2] sm:$0x3] %v471
        %s473 = scalar_lea.vmem %s210, 192 [#allocation4]
        %v474 = vld [vmem:[%s473] sm:$0xff]
        %v475 = vld [vmem:[%s473 + $0x8] sm:$0xff]
        %v476 = vld [vmem:[%s473 + $0x10] sm:$0xff]
        %v477 = vld [vmem:[%s473 + $0x18] sm:$0xff]
        %v478 = vld [vmem:[%s473 + $0x20] sm:$0xff]
        %v479 = vld [vmem:[%s473 + $0x28] sm:$0xff]
        %v480 = vld [vmem:[%s473 + $0x30] sm:$0xff]
        %v481 = vld [vmem:[%s473 + $0x38] sm:$0xff]
        %v482 = vld [vmem:[%s473 + $0x300] sm:$0xff]
        %v483 = vld [vmem:[%s473 + $0x308] sm:$0xff]
        %v484 = vld [vmem:[%s473 + $0x310] sm:$0xff]
        %v485 = vld [vmem:[%s473 + $0x318] sm:$0xff]
        %v486 = vld [vmem:[%s473 + $0x320] sm:$0xff]
        %v487 = vld [vmem:[%s473 + $0x328] sm:$0xff]
        %v488 = vld [vmem:[%s473 + $0x330] sm:$0xff]
        %v489 = vld [vmem:[%s473 + $0x338] sm:$0xff]
        %s490 = scalar_lea.vmem %s219, 192 [#allocation6]
        %v491 = vld [vmem:[%s490] sm:$0xff]
        %v492 = vld [vmem:[%s490 + $0x8] sm:$0xff]
        %v493 = vld [vmem:[%s490 + $0x10] sm:$0xff]
        %v494 = vld [vmem:[%s490 + $0x18] sm:$0xff]
        %v495 = vld [vmem:[%s490 + $0x20] sm:$0xff]
        %v496 = vld [vmem:[%s490 + $0x28] sm:$0xff]
        %v497 = vld [vmem:[%s490 + $0x30] sm:$0xff]
        %v498 = vld [vmem:[%s490 + $0x38] sm:$0xff]
        %v499 = vld [vmem:[#allocation2] sm:$0x3]
        %v500 = vmul.f32 %v474, %v491
        %v501 = vmul.f32 %v475, %v492
        %v502 = vmul.f32 %v476, %v493
        %v503 = vmul.f32 %v477, %v494
        %v504 = vmul.f32 %v478, %v495
        %v505 = vmul.f32 %v479, %v496
        %v506 = vmul.f32 %v480, %v497
        %v507 = vmul.f32 %v481, %v498
        %v508 = vmul.f32 %v482, %v491
        %v509 = vmul.f32 %v483, %v492
        %v510 = vmul.f32 %v484, %v493
        %v511 = vmul.f32 %v485, %v494
        %v512 = vmul.f32 %v486, %v495
        %v513 = vmul.f32 %v487, %v496
        %v514 = vmul.f32 %v488, %v497
        %v515 = vmul.f32 %v489, %v498
        %v516 = vadd.f32 %v500, %v501
        %v517 = vadd.f32 %v516, %v502
        %v518 = vadd.f32 %v517, %v503
        %v519 = vadd.f32 %v518, %v504
        %v520 = vadd.f32 %v519, %v505
        %v521 = vadd.f32 %v520, %v506
        %v522 = vadd.f32 %v521, %v507
        %v523 = vrot.slane %v522, 4
        %v524 = vadd.f32 %v522, %v523
        %v525 = vrot.slane %v524, 2
        %v526 = vadd.f32 %v524, %v525
        %v527 = vrot.slane %v526, 1
        %v528 = vadd.f32 %v526, %v527
        %v529 = vadd.f32 %v508, %v509
        %v530 = vadd.f32 %v529, %v510
        %v531 = vadd.f32 %v530, %v511
        %v532 = vadd.f32 %v531, %v512
        %v533 = vadd.f32 %v532, %v513
        %v534 = vadd.f32 %v533, %v514
        %v535 = vadd.f32 %v534, %v515
        %v536 = vrot.slane %v535, 4
        %v537 = vadd.f32 %v535, %v536
        %v538 = vrot.slane %v537, 2
        %v539 = vadd.f32 %v537, %v538
        %v540 = vrot.slane %v539, 1
        %v541 = vadd.f32 %v539, %v540
        %v544 = vsel %vm318, %v541, %v528
        %v546 = vadd.f32 %v499, %v544
        %547 = vst [vmem:[#allocation2] sm:$0x3] %v546
        %s548 = scalar_lea.vmem %s210, 256 [#allocation4]
        %v549 = vld [vmem:[%s548] sm:$0xff]
        %v550 = vld [vmem:[%s548 + $0x8] sm:$0xff]
        %v551 = vld [vmem:[%s548 + $0x10] sm:$0xff]
        %v552 = vld [vmem:[%s548 + $0x18] sm:$0xff]
        %v553 = vld [vmem:[%s548 + $0x20] sm:$0xff]
        %v554 = vld [vmem:[%s548 + $0x28] sm:$0xff]
        %v555 = vld [vmem:[%s548 + $0x30] sm:$0xff]
        %v556 = vld [vmem:[%s548 + $0x38] sm:$0xff]
        %v557 = vld [vmem:[%s548 + $0x300] sm:$0xff]
        %v558 = vld [vmem:[%s548 + $0x308] sm:$0xff]
        %v559 = vld [vmem:[%s548 + $0x310] sm:$0xff]
        %v560 = vld [vmem:[%s548 + $0x318] sm:$0xff]
        %v561 = vld [vmem:[%s548 + $0x320] sm:$0xff]
        %v562 = vld [vmem:[%s548 + $0x328] sm:$0xff]
        %v563 = vld [vmem:[%s548 + $0x330] sm:$0xff]
        %v564 = vld [vmem:[%s548 + $0x338] sm:$0xff]
        %s565 = scalar_lea.vmem %s219, 256 [#allocation6]
        %v566 = vld [vmem:[%s565] sm:$0xff]
        %v567 = vld [vmem:[%s565 + $0x8] sm:$0xff]
        %v568 = vld [vmem:[%s565 + $0x10] sm:$0xff]
        %v569 = vld [vmem:[%s565 + $0x18] sm:$0xff]
        %v570 = vld [vmem:[%s565 + $0x20] sm:$0xff]
        %v571 = vld [vmem:[%s565 + $0x28] sm:$0xff]
        %v572 = vld [vmem:[%s565 + $0x30] sm:$0xff]
        %v573 = vld [vmem:[%s565 + $0x38] sm:$0xff]
        %v574 = vld [vmem:[#allocation2] sm:$0x3]
        %v575 = vmul.f32 %v549, %v566
        %v576 = vmul.f32 %v550, %v567
        %v577 = vmul.f32 %v551, %v568
        %v578 = vmul.f32 %v552, %v569
        %v579 = vmul.f32 %v553, %v570
        %v580 = vmul.f32 %v554, %v571
        %v581 = vmul.f32 %v555, %v572
        %v582 = vmul.f32 %v556, %v573
        %v583 = vmul.f32 %v557, %v566
        %v584 = vmul.f32 %v558, %v567
        %v585 = vmul.f32 %v559, %v568
        %v586 = vmul.f32 %v560, %v569
        %v587 = vmul.f32 %v561, %v570
        %v588 = vmul.f32 %v562, %v571
        %v589 = vmul.f32 %v563, %v572
        %v590 = vmul.f32 %v564, %v573
        %v591 = vadd.f32 %v575, %v576
        %v592 = vadd.f32 %v591, %v577
        %v593 = vadd.f32 %v592, %v578
        %v594 = vadd.f32 %v593, %v579
        %v595 = vadd.f32 %v594, %v580
        %v596 = vadd.f32 %v595, %v581
        %v597 = vadd.f32 %v596, %v582
        %v598 = vrot.slane %v597, 4
        %v599 = vadd.f32 %v597, %v598
        %v600 = vrot.slane %v599, 2
        %v601 = vadd.f32 %v599, %v600
        %v602 = vrot.slane %v601, 1
        %v603 = vadd.f32 %v601, %v602
        %v604 = vadd.f32 %v583, %v584
        %v605 = vadd.f32 %v604, %v585
        %v606 = vadd.f32 %v605, %v586
        %v607 = vadd.f32 %v606, %v587
        %v608 = vadd.f32 %v607, %v588
        %v609 = vadd.f32 %v608, %v589
        %v610 = vadd.f32 %v609, %v590
        %v611 = vrot.slane %v610, 4
        %v612 = vadd.f32 %v610, %v611
        %v613 = vrot.slane %v612, 2
        %v614 = vadd.f32 %v612, %v613
        %v615 = vrot.slane %v614, 1
        %v616 = vadd.f32 %v614, %v615
        %v619 = vsel %vm318, %v616, %v603
        %v621 = vadd.f32 %v574, %v619
        %622 = vst [vmem:[#allocation2] sm:$0x3] %v621
        %s623 = scalar_lea.vmem %s210, 320 [#allocation4]
        %v624 = vld [vmem:[%s623] sm:$0xff]
        %v625 = vld [vmem:[%s623 + $0x8] sm:$0xff]
        %v626 = vld [vmem:[%s623 + $0x10] sm:$0xff]
        %v627 = vld [vmem:[%s623 + $0x18] sm:$0xff]
        %v628 = vld [vmem:[%s623 + $0x20] sm:$0xff]
        %v629 = vld [vmem:[%s623 + $0x28] sm:$0xff]
        %v630 = vld [vmem:[%s623 + $0x30] sm:$0xff]
        %v631 = vld [vmem:[%s623 + $0x38] sm:$0xff]
        %v632 = vld [vmem:[%s623 + $0x300] sm:$0xff]
        %v633 = vld [vmem:[%s623 + $0x308] sm:$0xff]
        %v634 = vld [vmem:[%s623 + $0x310] sm:$0xff]
        %v635 = vld [vmem:[%s623 + $0x318] sm:$0xff]
        %v636 = vld [vmem:[%s623 + $0x320] sm:$0xff]
        %v637 = vld [vmem:[%s623 + $0x328] sm:$0xff]
        %v638 = vld [vmem:[%s623 + $0x330] sm:$0xff]
        %v639 = vld [vmem:[%s623 + $0x338] sm:$0xff]
        %s640 = scalar_lea.vmem %s219, 320 [#allocation6]
        %v641 = vld [vmem:[%s640] sm:$0xff]
        %v642 = vld [vmem:[%s640 + $0x8] sm:$0xff]
        %v643 = vld [vmem:[%s640 + $0x10] sm:$0xff]
        %v644 = vld [vmem:[%s640 + $0x18] sm:$0xff]
        %v645 = vld [vmem:[%s640 + $0x20] sm:$0xff]
        %v646 = vld [vmem:[%s640 + $0x28] sm:$0xff]
        %v647 = vld [vmem:[%s640 + $0x30] sm:$0xff]
        %v648 = vld [vmem:[%s640 + $0x38] sm:$0xff]
        %v649 = vld [vmem:[#allocation2] sm:$0x3]
        %v650 = vmul.f32 %v624, %v641
        %v651 = vmul.f32 %v625, %v642
        %v652 = vmul.f32 %v626, %v643
        %v653 = vmul.f32 %v627, %v644
        %v654 = vmul.f32 %v628, %v645
        %v655 = vmul.f32 %v629, %v646
        %v656 = vmul.f32 %v630, %v647
        %v657 = vmul.f32 %v631, %v648
        %v658 = vmul.f32 %v632, %v641
        %v659 = vmul.f32 %v633, %v642
        %v660 = vmul.f32 %v634, %v643
        %v661 = vmul.f32 %v635, %v644
        %v662 = vmul.f32 %v636, %v645
        %v663 = vmul.f32 %v637, %v646
        %v664 = vmul.f32 %v638, %v647
        %v665 = vmul.f32 %v639, %v648
        %v666 = vadd.f32 %v650, %v651
        %v667 = vadd.f32 %v666, %v652
        %v668 = vadd.f32 %v667, %v653
        %v669 = vadd.f32 %v668, %v654
        %v670 = vadd.f32 %v669, %v655
        %v671 = vadd.f32 %v670, %v656
        %v672 = vadd.f32 %v671, %v657
        %v673 = vrot.slane %v672, 4
        %v674 = vadd.f32 %v672, %v673
        %v675 = vrot.slane %v674, 2
        %v676 = vadd.f32 %v674, %v675
        %v677 = vrot.slane %v676, 1
        %v678 = vadd.f32 %v676, %v677
        %v679 = vadd.f32 %v658, %v659
        %v680 = vadd.f32 %v679, %v660
        %v681 = vadd.f32 %v680, %v661
        %v682 = vadd.f32 %v681, %v662
        %v683 = vadd.f32 %v682, %v663
        %v684 = vadd.f32 %v683, %v664
        %v685 = vadd.f32 %v684, %v665
        %v686 = vrot.slane %v685, 4
        %v687 = vadd.f32 %v685, %v686
        %v688 = vrot.slane %v687, 2
        %v689 = vadd.f32 %v687, %v688
        %v690 = vrot.slane %v689, 1
        %v691 = vadd.f32 %v689, %v690
        %v694 = vsel %vm318, %v691, %v678
        %v696 = vadd.f32 %v649, %v694
        %697 = vst [vmem:[#allocation2] sm:$0x3] %v696
        %s698 = scalar_lea.vmem %s210, 384 [#allocation4]
        %v699 = vld [vmem:[%s698] sm:$0xff]
        %v700 = vld [vmem:[%s698 + $0x8] sm:$0xff]
        %v701 = vld [vmem:[%s698 + $0x10] sm:$0xff]
        %v702 = vld [vmem:[%s698 + $0x18] sm:$0xff]
        %v703 = vld [vmem:[%s698 + $0x20] sm:$0xff]
        %v704 = vld [vmem:[%s698 + $0x28] sm:$0xff]
        %v705 = vld [vmem:[%s698 + $0x30] sm:$0xff]
        %v706 = vld [vmem:[%s698 + $0x38] sm:$0xff]
        %v707 = vld [vmem:[%s698 + $0x300] sm:$0xff]
        %v708 = vld [vmem:[%s698 + $0x308] sm:$0xff]
        %v709 = vld [vmem:[%s698 + $0x310] sm:$0xff]
        %v710 = vld [vmem:[%s698 + $0x318] sm:$0xff]
        %v711 = vld [vmem:[%s698 + $0x320] sm:$0xff]
        %v712 = vld [vmem:[%s698 + $0x328] sm:$0xff]
        %v713 = vld [vmem:[%s698 + $0x330] sm:$0xff]
        %v714 = vld [vmem:[%s698 + $0x338] sm:$0xff]
        %s715 = scalar_lea.vmem %s219, 384 [#allocation6]
        %v716 = vld [vmem:[%s715] sm:$0xff]
        %v717 = vld [vmem:[%s715 + $0x8] sm:$0xff]
        %v718 = vld [vmem:[%s715 + $0x10] sm:$0xff]
        %v719 = vld [vmem:[%s715 + $0x18] sm:$0xff]
        %v720 = vld [vmem:[%s715 + $0x20] sm:$0xff]
        %v721 = vld [vmem:[%s715 + $0x28] sm:$0xff]
        %v722 = vld [vmem:[%s715 + $0x30] sm:$0xff]
        %v723 = vld [vmem:[%s715 + $0x38] sm:$0xff]
        %v724 = vld [vmem:[#allocation2] sm:$0x3]
        %v725 = vmul.f32 %v699, %v716
        %v726 = vmul.f32 %v700, %v717
        %v727 = vmul.f32 %v701, %v718
        %v728 = vmul.f32 %v702, %v719
        %v729 = vmul.f32 %v703, %v720
        %v730 = vmul.f32 %v704, %v721
        %v731 = vmul.f32 %v705, %v722
        %v732 = vmul.f32 %v706, %v723
        %v733 = vmul.f32 %v707, %v716
        %v734 = vmul.f32 %v708, %v717
        %v735 = vmul.f32 %v709, %v718
        %v736 = vmul.f32 %v710, %v719
        %v737 = vmul.f32 %v711, %v720
        %v738 = vmul.f32 %v712, %v721
        %v739 = vmul.f32 %v713, %v722
        %v740 = vmul.f32 %v714, %v723
        %v741 = vadd.f32 %v725, %v726
        %v742 = vadd.f32 %v741, %v727
        %v743 = vadd.f32 %v742, %v728
        %v744 = vadd.f32 %v743, %v729
        %v745 = vadd.f32 %v744, %v730
        %v746 = vadd.f32 %v745, %v731
        %v747 = vadd.f32 %v746, %v732
        %v748 = vrot.slane %v747, 4
        %v749 = vadd.f32 %v747, %v748
        %v750 = vrot.slane %v749, 2
        %v751 = vadd.f32 %v749, %v750
        %v752 = vrot.slane %v751, 1
        %v753 = vadd.f32 %v751, %v752
        %v754 = vadd.f32 %v733, %v734
        %v755 = vadd.f32 %v754, %v735
        %v756 = vadd.f32 %v755, %v736
        %v757 = vadd.f32 %v756, %v737
        %v758 = vadd.f32 %v757, %v738
        %v759 = vadd.f32 %v758, %v739
        %v760 = vadd.f32 %v759, %v740
        %v761 = vrot.slane %v760, 4
        %v762 = vadd.f32 %v760, %v761
        %v763 = vrot.slane %v762, 2
        %v764 = vadd.f32 %v762, %v763
        %v765 = vrot.slane %v764, 1
        %v766 = vadd.f32 %v764, %v765
        %v769 = vsel %vm318, %v766, %v753
        %v771 = vadd.f32 %v724, %v769
        %772 = vst [vmem:[#allocation2] sm:$0x3] %v771
        %s773 = scalar_lea.vmem %s210, 448 [#allocation4]
        %v774 = vld [vmem:[%s773] sm:$0xff]
        %v775 = vld [vmem:[%s773 + $0x8] sm:$0xff]
        %v776 = vld [vmem:[%s773 + $0x10] sm:$0xff]
        %v777 = vld [vmem:[%s773 + $0x18] sm:$0xff]
        %v778 = vld [vmem:[%s773 + $0x20] sm:$0xff]
        %v779 = vld [vmem:[%s773 + $0x28] sm:$0xff]
        %v780 = vld [vmem:[%s773 + $0x30] sm:$0xff]
        %v781 = vld [vmem:[%s773 + $0x38] sm:$0xff]
        %v782 = vld [vmem:[%s773 + $0x300] sm:$0xff]
        %v783 = vld [vmem:[%s773 + $0x308] sm:$0xff]
        %v784 = vld [vmem:[%s773 + $0x310] sm:$0xff]
        %v785 = vld [vmem:[%s773 + $0x318] sm:$0xff]
        %v786 = vld [vmem:[%s773 + $0x320] sm:$0xff]
        %v787 = vld [vmem:[%s773 + $0x328] sm:$0xff]
        %v788 = vld [vmem:[%s773 + $0x330] sm:$0xff]
        %v789 = vld [vmem:[%s773 + $0x338] sm:$0xff]
        %s790 = scalar_lea.vmem %s219, 448 [#allocation6]
        %v791 = vld [vmem:[%s790] sm:$0xff]
        %v792 = vld [vmem:[%s790 + $0x8] sm:$0xff]
        %v793 = vld [vmem:[%s790 + $0x10] sm:$0xff]
        %v794 = vld [vmem:[%s790 + $0x18] sm:$0xff]
        %v795 = vld [vmem:[%s790 + $0x20] sm:$0xff]
        %v796 = vld [vmem:[%s790 + $0x28] sm:$0xff]
        %v797 = vld [vmem:[%s790 + $0x30] sm:$0xff]
        %v798 = vld [vmem:[%s790 + $0x38] sm:$0xff]
        %v799 = vld [vmem:[#allocation2] sm:$0x3]
        %v800 = vmul.f32 %v774, %v791
        %v801 = vmul.f32 %v775, %v792
        %v802 = vmul.f32 %v776, %v793
        %v803 = vmul.f32 %v777, %v794
        %v804 = vmul.f32 %v778, %v795
        %v805 = vmul.f32 %v779, %v796
        %v806 = vmul.f32 %v780, %v797
        %v807 = vmul.f32 %v781, %v798
        %v808 = vmul.f32 %v782, %v791
        %v809 = vmul.f32 %v783, %v792
        %v810 = vmul.f32 %v784, %v793
        %v811 = vmul.f32 %v785, %v794
        %v812 = vmul.f32 %v786, %v795
        %v813 = vmul.f32 %v787, %v796
        %v814 = vmul.f32 %v788, %v797
        %v815 = vmul.f32 %v789, %v798
        %v816 = vadd.f32 %v800, %v801
        %v817 = vadd.f32 %v816, %v802
        %v818 = vadd.f32 %v817, %v803
        %v819 = vadd.f32 %v818, %v804
        %v820 = vadd.f32 %v819, %v805
        %v821 = vadd.f32 %v820, %v806
        %v822 = vadd.f32 %v821, %v807
        %v823 = vrot.slane %v822, 4
        %v824 = vadd.f32 %v822, %v823
        %v825 = vrot.slane %v824, 2
        %v826 = vadd.f32 %v824, %v825
        %v827 = vrot.slane %v826, 1
        %v828 = vadd.f32 %v826, %v827
        %v829 = vadd.f32 %v808, %v809
        %v830 = vadd.f32 %v829, %v810
        %v831 = vadd.f32 %v830, %v811
        %v832 = vadd.f32 %v831, %v812
        %v833 = vadd.f32 %v832, %v813
        %v834 = vadd.f32 %v833, %v814
        %v835 = vadd.f32 %v834, %v815
        %v836 = vrot.slane %v835, 4
        %v837 = vadd.f32 %v835, %v836
        %v838 = vrot.slane %v837, 2
        %v839 = vadd.f32 %v837, %v838
        %v840 = vrot.slane %v839, 1
        %v841 = vadd.f32 %v839, %v840
        %v844 = vsel %vm318, %v841, %v828
        %v846 = vadd.f32 %v799, %v844
        %847 = vst [vmem:[#allocation2] sm:$0x3] %v846
        %s848 = scalar_lea.vmem %s210, 512 [#allocation4]
        %v849 = vld [vmem:[%s848] sm:$0xff]
        %v850 = vld [vmem:[%s848 + $0x8] sm:$0xff]
        %v851 = vld [vmem:[%s848 + $0x10] sm:$0xff]
        %v852 = vld [vmem:[%s848 + $0x18] sm:$0xff]
        %v853 = vld [vmem:[%s848 + $0x20] sm:$0xff]
        %v854 = vld [vmem:[%s848 + $0x28] sm:$0xff]
        %v855 = vld [vmem:[%s848 + $0x30] sm:$0xff]
        %v856 = vld [vmem:[%s848 + $0x38] sm:$0xff]
        %v857 = vld [vmem:[%s848 + $0x300] sm:$0xff]
        %v858 = vld [vmem:[%s848 + $0x308] sm:$0xff]
        %v859 = vld [vmem:[%s848 + $0x310] sm:$0xff]
        %v860 = vld [vmem:[%s848 + $0x318] sm:$0xff]
        %v861 = vld [vmem:[%s848 + $0x320] sm:$0xff]
        %v862 = vld [vmem:[%s848 + $0x328] sm:$0xff]
        %v863 = vld [vmem:[%s848 + $0x330] sm:$0xff]
        %v864 = vld [vmem:[%s848 + $0x338] sm:$0xff]
        %s865 = scalar_lea.vmem %s219, 512 [#allocation6]
        %v866 = vld [vmem:[%s865] sm:$0xff]
        %v867 = vld [vmem:[%s865 + $0x8] sm:$0xff]
        %v868 = vld [vmem:[%s865 + $0x10] sm:$0xff]
        %v869 = vld [vmem:[%s865 + $0x18] sm:$0xff]
        %v870 = vld [vmem:[%s865 + $0x20] sm:$0xff]
        %v871 = vld [vmem:[%s865 + $0x28] sm:$0xff]
        %v872 = vld [vmem:[%s865 + $0x30] sm:$0xff]
        %v873 = vld [vmem:[%s865 + $0x38] sm:$0xff]
        %v874 = vld [vmem:[#allocation2] sm:$0x3]
        %v875 = vmul.f32 %v849, %v866
        %v876 = vmul.f32 %v850, %v867
        %v877 = vmul.f32 %v851, %v868
        %v878 = vmul.f32 %v852, %v869
        %v879 = vmul.f32 %v853, %v870
        %v880 = vmul.f32 %v854, %v871
        %v881 = vmul.f32 %v855, %v872
        %v882 = vmul.f32 %v856, %v873
        %v883 = vmul.f32 %v857, %v866
        %v884 = vmul.f32 %v858, %v867
        %v885 = vmul.f32 %v859, %v868
        %v886 = vmul.f32 %v860, %v869
        %v887 = vmul.f32 %v861, %v870
        %v888 = vmul.f32 %v862, %v871
        %v889 = vmul.f32 %v863, %v872
        %v890 = vmul.f32 %v864, %v873
        %v891 = vadd.f32 %v875, %v876
        %v892 = vadd.f32 %v891, %v877
        %v893 = vadd.f32 %v892, %v878
        %v894 = vadd.f32 %v893, %v879
        %v895 = vadd.f32 %v894, %v880
        %v896 = vadd.f32 %v895, %v881
        %v897 = vadd.f32 %v896, %v882
        %v898 = vrot.slane %v897, 4
        %v899 = vadd.f32 %v897, %v898
        %v900 = vrot.slane %v899, 2
        %v901 = vadd.f32 %v899, %v900
        %v902 = vrot.slane %v901, 1
        %v903 = vadd.f32 %v901, %v902
        %v904 = vadd.f32 %v883, %v884
        %v905 = vadd.f32 %v904, %v885
        %v906 = vadd.f32 %v905, %v886
        %v907 = vadd.f32 %v906, %v887
        %v908 = vadd.f32 %v907, %v888
        %v909 = vadd.f32 %v908, %v889
        %v910 = vadd.f32 %v909, %v890
        %v911 = vrot.slane %v910, 4
        %v912 = vadd.f32 %v910, %v911
        %v913 = vrot.slane %v912, 2
        %v914 = vadd.f32 %v912, %v913
        %v915 = vrot.slane %v914, 1
        %v916 = vadd.f32 %v914, %v915
        %v919 = vsel %vm318, %v916, %v903
        %v921 = vadd.f32 %v874, %v919
        %922 = vst [vmem:[#allocation2] sm:$0x3] %v921
        %s923 = scalar_lea.vmem %s210, 576 [#allocation4]
        %v924 = vld [vmem:[%s923] sm:$0xff]
        %v925 = vld [vmem:[%s923 + $0x8] sm:$0xff]
        %v926 = vld [vmem:[%s923 + $0x10] sm:$0xff]
        %v927 = vld [vmem:[%s923 + $0x18] sm:$0xff]
        %v928 = vld [vmem:[%s923 + $0x20] sm:$0xff]
        %v929 = vld [vmem:[%s923 + $0x28] sm:$0xff]
        %v930 = vld [vmem:[%s923 + $0x30] sm:$0xff]
        %v931 = vld [vmem:[%s923 + $0x38] sm:$0xff]
        %v932 = vld [vmem:[%s923 + $0x300] sm:$0xff]
        %v933 = vld [vmem:[%s923 + $0x308] sm:$0xff]
        %v934 = vld [vmem:[%s923 + $0x310] sm:$0xff]
        %v935 = vld [vmem:[%s923 + $0x318] sm:$0xff]
        %v936 = vld [vmem:[%s923 + $0x320] sm:$0xff]
        %v937 = vld [vmem:[%s923 + $0x328] sm:$0xff]
        %v938 = vld [vmem:[%s923 + $0x330] sm:$0xff]
        %v939 = vld [vmem:[%s923 + $0x338] sm:$0xff]
        %s940 = scalar_lea.vmem %s219, 576 [#allocation6]
        %v941 = vld [vmem:[%s940] sm:$0xff]
        %v942 = vld [vmem:[%s940 + $0x8] sm:$0xff]
        %v943 = vld [vmem:[%s940 + $0x10] sm:$0xff]
        %v944 = vld [vmem:[%s940 + $0x18] sm:$0xff]
        %v945 = vld [vmem:[%s940 + $0x20] sm:$0xff]
        %v946 = vld [vmem:[%s940 + $0x28] sm:$0xff]
        %v947 = vld [vmem:[%s940 + $0x30] sm:$0xff]
        %v948 = vld [vmem:[%s940 + $0x38] sm:$0xff]
        %v949 = vld [vmem:[#allocation2] sm:$0x3]
        %v950 = vmul.f32 %v924, %v941
        %v951 = vmul.f32 %v925, %v942
        %v952 = vmul.f32 %v926, %v943
        %v953 = vmul.f32 %v927, %v944
        %v954 = vmul.f32 %v928, %v945
        %v955 = vmul.f32 %v929, %v946
        %v956 = vmul.f32 %v930, %v947
        %v957 = vmul.f32 %v931, %v948
        %v958 = vmul.f32 %v932, %v941
        %v959 = vmul.f32 %v933, %v942
        %v960 = vmul.f32 %v934, %v943
        %v961 = vmul.f32 %v935, %v944
        %v962 = vmul.f32 %v936, %v945
        %v963 = vmul.f32 %v937, %v946
        %v964 = vmul.f32 %v938, %v947
        %v965 = vmul.f32 %v939, %v948
        %v966 = vadd.f32 %v950, %v951
        %v967 = vadd.f32 %v966, %v952
        %v968 = vadd.f32 %v967, %v953
        %v969 = vadd.f32 %v968, %v954
        %v970 = vadd.f32 %v969, %v955
        %v971 = vadd.f32 %v970, %v956
        %v972 = vadd.f32 %v971, %v957
        %v973 = vrot.slane %v972, 4
        %v974 = vadd.f32 %v972, %v973
        %v975 = vrot.slane %v974, 2
        %v976 = vadd.f32 %v974, %v975
        %v977 = vrot.slane %v976, 1
        %v978 = vadd.f32 %v976, %v977
        %v979 = vadd.f32 %v958, %v959
        %v980 = vadd.f32 %v979, %v960
        %v981 = vadd.f32 %v980, %v961
        %v982 = vadd.f32 %v981, %v962
        %v983 = vadd.f32 %v982, %v963
        %v984 = vadd.f32 %v983, %v964
        %v985 = vadd.f32 %v984, %v965
        %v986 = vrot.slane %v985, 4
        %v987 = vadd.f32 %v985, %v986
        %v988 = vrot.slane %v987, 2
        %v989 = vadd.f32 %v987, %v988
        %v990 = vrot.slane %v989, 1
        %v991 = vadd.f32 %v989, %v990
        %v994 = vsel %vm318, %v991, %v978
        %v996 = vadd.f32 %v949, %v994
        %997 = vst [vmem:[#allocation2] sm:$0x3] %v996
        %s998 = scalar_lea.vmem %s210, 640 [#allocation4]
        %v999 = vld [vmem:[%s998] sm:$0xff]
        %v1000 = vld [vmem:[%s998 + $0x8] sm:$0xff]
        %v1001 = vld [vmem:[%s998 + $0x10] sm:$0xff]
        %v1002 = vld [vmem:[%s998 + $0x18] sm:$0xff]
        %v1003 = vld [vmem:[%s998 + $0x20] sm:$0xff]
        %v1004 = vld [vmem:[%s998 + $0x28] sm:$0xff]
        %v1005 = vld [vmem:[%s998 + $0x30] sm:$0xff]
        %v1006 = vld [vmem:[%s998 + $0x38] sm:$0xff]
        %v1007 = vld [vmem:[%s998 + $0x300] sm:$0xff]
        %v1008 = vld [vmem:[%s998 + $0x308] sm:$0xff]
        %v1009 = vld [vmem:[%s998 + $0x310] sm:$0xff]
        %v1010 = vld [vmem:[%s998 + $0x318] sm:$0xff]
        %v1011 = vld [vmem:[%s998 + $0x320] sm:$0xff]
        %v1012 = vld [vmem:[%s998 + $0x328] sm:$0xff]
        %v1013 = vld [vmem:[%s998 + $0x330] sm:$0xff]
        %v1014 = vld [vmem:[%s998 + $0x338] sm:$0xff]
        %s1015 = scalar_lea.vmem %s219, 640 [#allocation6]
        %v1016 = vld [vmem:[%s1015] sm:$0xff]
        %v1017 = vld [vmem:[%s1015 + $0x8] sm:$0xff]
        %v1018 = vld [vmem:[%s1015 + $0x10] sm:$0xff]
        %v1019 = vld [vmem:[%s1015 + $0x18] sm:$0xff]
        %v1020 = vld [vmem:[%s1015 + $0x20] sm:$0xff]
        %v1021 = vld [vmem:[%s1015 + $0x28] sm:$0xff]
        %v1022 = vld [vmem:[%s1015 + $0x30] sm:$0xff]
        %v1023 = vld [vmem:[%s1015 + $0x38] sm:$0xff]
        %v1024 = vld [vmem:[#allocation2] sm:$0x3]
        %v1025 = vmul.f32 %v999, %v1016
        %v1026 = vmul.f32 %v1000, %v1017
        %v1027 = vmul.f32 %v1001, %v1018
        %v1028 = vmul.f32 %v1002, %v1019
        %v1029 = vmul.f32 %v1003, %v1020
        %v1030 = vmul.f32 %v1004, %v1021
        %v1031 = vmul.f32 %v1005, %v1022
        %v1032 = vmul.f32 %v1006, %v1023
        %v1033 = vmul.f32 %v1007, %v1016
        %v1034 = vmul.f32 %v1008, %v1017
        %v1035 = vmul.f32 %v1009, %v1018
        %v1036 = vmul.f32 %v1010, %v1019
        %v1037 = vmul.f32 %v1011, %v1020
        %v1038 = vmul.f32 %v1012, %v1021
        %v1039 = vmul.f32 %v1013, %v1022
        %v1040 = vmul.f32 %v1014, %v1023
        %v1041 = vadd.f32 %v1025, %v1026
        %v1042 = vadd.f32 %v1041, %v1027
        %v1043 = vadd.f32 %v1042, %v1028
        %v1044 = vadd.f32 %v1043, %v1029
        %v1045 = vadd.f32 %v1044, %v1030
        %v1046 = vadd.f32 %v1045, %v1031
        %v1047 = vadd.f32 %v1046, %v1032
        %v1048 = vrot.slane %v1047, 4
        %v1049 = vadd.f32 %v1047, %v1048
        %v1050 = vrot.slane %v1049, 2
        %v1051 = vadd.f32 %v1049, %v1050
        %v1052 = vrot.slane %v1051, 1
        %v1053 = vadd.f32 %v1051, %v1052
        %v1054 = vadd.f32 %v1033, %v1034
        %v1055 = vadd.f32 %v1054, %v1035
        %v1056 = vadd.f32 %v1055, %v1036
        %v1057 = vadd.f32 %v1056, %v1037
        %v1058 = vadd.f32 %v1057, %v1038
        %v1059 = vadd.f32 %v1058, %v1039
        %v1060 = vadd.f32 %v1059, %v1040
        %v1061 = vrot.slane %v1060, 4
        %v1062 = vadd.f32 %v1060, %v1061
        %v1063 = vrot.slane %v1062, 2
        %v1064 = vadd.f32 %v1062, %v1063
        %v1065 = vrot.slane %v1064, 1
        %v1066 = vadd.f32 %v1064, %v1065
        %v1069 = vsel %vm318, %v1066, %v1053
        %v1071 = vadd.f32 %v1024, %v1069
        %1072 = vst [vmem:[#allocation2] sm:$0x3] %v1071
        %s1073 = scalar_lea.vmem %s210, 704 [#allocation4]
        %v1074 = vld [vmem:[%s1073] sm:$0xff]
        %v1075 = vld [vmem:[%s1073 + $0x8] sm:$0xff]
        %v1076 = vld [vmem:[%s1073 + $0x10] sm:$0xff]
        %v1077 = vld [vmem:[%s1073 + $0x18] sm:$0xff]
        %v1078 = vld [vmem:[%s1073 + $0x20] sm:$0xff]
        %v1079 = vld [vmem:[%s1073 + $0x28] sm:$0xff]
        %v1080 = vld [vmem:[%s1073 + $0x30] sm:$0xff]
        %v1081 = vld [vmem:[%s1073 + $0x38] sm:$0xff]
        %v1082 = vld [vmem:[%s1073 + $0x300] sm:$0xff]
        %v1083 = vld [vmem:[%s1073 + $0x308] sm:$0xff]
        %v1084 = vld [vmem:[%s1073 + $0x310] sm:$0xff]
        %v1085 = vld [vmem:[%s1073 + $0x318] sm:$0xff]
        %v1086 = vld [vmem:[%s1073 + $0x320] sm:$0xff]
        %v1087 = vld [vmem:[%s1073 + $0x328] sm:$0xff]
        %v1088 = vld [vmem:[%s1073 + $0x330] sm:$0xff]
        %v1089 = vld [vmem:[%s1073 + $0x338] sm:$0xff]
        %s1090 = scalar_lea.vmem %s219, 704 [#allocation6]
        %v1091 = vld [vmem:[%s1090] sm:$0xff]
        %v1092 = vld [vmem:[%s1090 + $0x8] sm:$0xff]
        %v1093 = vld [vmem:[%s1090 + $0x10] sm:$0xff]
        %v1094 = vld [vmem:[%s1090 + $0x18] sm:$0xff]
        %v1095 = vld [vmem:[%s1090 + $0x20] sm:$0xff]
        %v1096 = vld [vmem:[%s1090 + $0x28] sm:$0xff]
        %v1097 = vld [vmem:[%s1090 + $0x30] sm:$0xff]
        %v1098 = vld [vmem:[%s1090 + $0x38] sm:$0xff]
        %v1099 = vld [vmem:[#allocation2] sm:$0x3]
        %v1100 = vmul.f32 %v1074, %v1091
        %v1101 = vmul.f32 %v1075, %v1092
        %v1102 = vmul.f32 %v1076, %v1093
        %v1103 = vmul.f32 %v1077, %v1094
        %v1104 = vmul.f32 %v1078, %v1095
        %v1105 = vmul.f32 %v1079, %v1096
        %v1106 = vmul.f32 %v1080, %v1097
        %v1107 = vmul.f32 %v1081, %v1098
        %v1108 = vmul.f32 %v1082, %v1091
        %v1109 = vmul.f32 %v1083, %v1092
        %v1110 = vmul.f32 %v1084, %v1093
        %v1111 = vmul.f32 %v1085, %v1094
        %v1112 = vmul.f32 %v1086, %v1095
        %v1113 = vmul.f32 %v1087, %v1096
        %v1114 = vmul.f32 %v1088, %v1097
        %v1115 = vmul.f32 %v1089, %v1098
        %v1116 = vadd.f32 %v1100, %v1101
        %v1117 = vadd.f32 %v1116, %v1102
        %v1118 = vadd.f32 %v1117, %v1103
        %v1119 = vadd.f32 %v1118, %v1104
        %v1120 = vadd.f32 %v1119, %v1105
        %v1121 = vadd.f32 %v1120, %v1106
        %v1122 = vadd.f32 %v1121, %v1107
        %v1123 = vrot.slane %v1122, 4
        %v1124 = vadd.f32 %v1122, %v1123
        %v1125 = vrot.slane %v1124, 2
        %v1126 = vadd.f32 %v1124, %v1125
        %v1127 = vrot.slane %v1126, 1
        %v1128 = vadd.f32 %v1126, %v1127
        %v1129 = vadd.f32 %v1108, %v1109
        %v1130 = vadd.f32 %v1129, %v1110
        %v1131 = vadd.f32 %v1130, %v1111
        %v1132 = vadd.f32 %v1131, %v1112
        %v1133 = vadd.f32 %v1132, %v1113
        %v1134 = vadd.f32 %v1133, %v1114
        %v1135 = vadd.f32 %v1134, %v1115
        %v1136 = vrot.slane %v1135, 4
        %v1137 = vadd.f32 %v1135, %v1136
        %v1138 = vrot.slane %v1137, 2
        %v1139 = vadd.f32 %v1137, %v1138
        %v1140 = vrot.slane %v1139, 1
        %v1141 = vadd.f32 %v1139, %v1140
        %v1144 = vsel %vm318, %v1141, %v1128
        %v1146 = vadd.f32 %v1099, %v1144
        %1147 = vst [vmem:[#allocation2] sm:$0x3] %v1146
        %p1148 = scmp.eq.s32.totalorder %s21, 1
        // Predicated region
        $region45: #{tpu_custom_call.1} parent=31 // pred_check
          %p1149 = pneg %p1148
        $region46: #{tpu_custom_call.1} parent=31 // pred_check_branch
          %1151 = sbr.rel (%p1149) target = $region48
        $region47: #{tpu_custom_call.1} parent=31 // pred_region
          %v1152 = vld [vmem:[#allocation2] sm:$0x3]
          %vm1153 = vcmask 1041408
          %v1154 = vsel %vm1153, %v1152, 0.0
          %1155 = vadd.xlane.f32.xlu0 %v1154
          %v1156 = vpop.xlane.xlu0 %1155
          %s1157 = sld [smem:[#allocation3]]
          %v1158 = vstv %s1157
          %v1159 = vadd.f32 %v1156, %v1158
          %vm1160 = vcmask 1024
          %1161 = vst.msk [vmem:[%s3] sm:$0x3] %vm1160, %v1159
        $region48: #{tpu_custom_call.1} parent=31 // pred_fallthru
          _
        // Predicated region
        $region49: #{tpu_custom_call.1} parent=31 // pred_check
          %p1162 = pneg %p107
        $region50: #{tpu_custom_call.1} parent=31 // pred_check_branch
          %1164 = sbr.rel (%p1162) target = $region52
        $region51: #{tpu_custom_call.1} parent=31 // pred_region
          _
        $region52: #{tpu_custom_call.1} parent=31 // pred_fallthru
          _
        // Predicated region
        $region53: #{tpu_custom_call.1} parent=31 // pred_check
          %p1165 = pneg %p107
        $region54: #{tpu_custom_call.1} parent=31 // pred_check_branch
          %1167 = sbr.rel (%p1165) target = $region56
        $region55: #{tpu_custom_call.1} parent=31 // pred_region
          _
        $region56: #{tpu_custom_call.1} parent=31 // pred_fallthru
          _
      $region32: #{tpu_custom_call.1} parent=5 // pred_fallthru
        _
      %p1168 = scmp.le.s32.totalorder 2, %s16
      // Predicated region
      $region57: #{tpu_custom_call.1} parent=5 // pred_check
        %p1169 = pneg %p1168
      $region58: #{tpu_custom_call.1} parent=5 // pred_check_branch
        %1171 = sbr.rel (%p1169) target = $region60
      $region59: #{tpu_custom_call.1} parent=5 // pred_region
        %s1172 = ssub.s32 %s16, 2
      $region60: #{tpu_custom_call.1} parent=5 // pred_fallthru
        _
    $region6: #{tpu_custom_call.1} parent=1 // loop_footer
      %s20 = sadd.s32 1, %s16
    $region7: #{tpu_custom_call.1} parent=1 // loop_footer_branch
      %15 = sbr.rel target = $region3
    $region8: #{tpu_custom_call.1} parent=1 // loop_exit
      _
    %1173 = vsyncpa [#allocation5], 1
    %s1174 = scalar_lea.sflag [#allocation5], 1
    %1175 = vsyncpa %s1174, 1
    %1176 = vsyncpa [#allocation7], 1
    %s1177 = scalar_lea.sflag [#allocation7], 1
    %1178 = vsyncpa %s1177, 1

</llo_original>
